<compile_context>
chip_gen: v7x
topology: tpu7x:2x2x1
jax: 0.10.0
libtpu: 0.0.40
codegen_flags: <defaults>
</compile_context>

<pallas_src>
import functools

import jax
import jax.numpy as jnp
from jax import lax
from jax.experimental import pallas as pl
from jax.experimental.pallas import tpu as pltpu


def _lstm_recurrence_kernel(xp_ref, w_ref, out_ref, h_scr, c_scr, *, block_t):
    """Grid = (batch_blocks, time_blocks). One grid step runs `block_t` LSTM
    timesteps with h/c carried as loop values (vregs); the carry persists
    across time blocks in VMEM scratch."""
    tb = pl.program_id(1)

    @pl.when(tb == 0)
    def _():
        h_scr[...] = jnp.zeros_like(h_scr)
        c_scr[...] = jnp.zeros_like(c_scr)

    # Resident per-gate hidden-to-hidden weights, already (in, out)-transposed
    # and dropout-mask-multiplied in the wrapper. Loaded once per time block.
    w_i = w_ref[0]
    w_f = w_ref[1]
    w_g = w_ref[2]
    w_o = w_ref[3]
    w_dt = w_i.dtype

    def step(t, carry):
        h, c = carry
        xp = xp_ref[t]                       # (4, Bb, H): x@W_ih.T + bias, f32
        hd = h.astype(w_dt)                  # bf16-friendly MXU operand
        pre_i = xp[0] + jnp.dot(hd, w_i, preferred_element_type=jnp.float32)
        pre_f = xp[1] + jnp.dot(hd, w_f, preferred_element_type=jnp.float32)
        pre_g = xp[2] + jnp.dot(hd, w_g, preferred_element_type=jnp.float32)
        pre_o = xp[3] + jnp.dot(hd, w_o, preferred_element_type=jnp.float32)
        i_g = jax.nn.sigmoid(pre_i)
        f_g = jax.nn.sigmoid(pre_f)
        g_g = jnp.tanh(pre_g)
        o_g = jax.nn.sigmoid(pre_o)
        c_new = f_g * c + i_g * g_g
        h_new = o_g * jnp.tanh(c_new)
        out_ref[t] = h_new.astype(out_ref.dtype)   # single store per step
        return h_new, c_new

    h0 = h_scr[...]
    c0 = c_scr[...]
    h_f, c_f = lax.fori_loop(0, block_t, step, (h0, c0), unroll=True)
    h_scr[...] = h_f
    c_scr[...] = c_f


def weight_dropout_lstm(x, w_ih, w_hh_raw, b_ih, b_hh, *, weight_p,
                        training=False, key=None, block_t=4, block_b=None):
    """Forward of WeightDropoutStepwise wrapping a 1-layer LSTM (h0 = c0 = 0).

    Returns the full hidden-state sequence (T, B, H), matching the first
    output of torch.nn.LSTM.
    """
    T, B, I = x.shape
    fourH, H = w_hh_raw.shape
    assert fourH == 4 * H

    if block_b is None:
        block_b = B           # must equal B or be a multiple of 8 (tile rule)
    assert B % block_b == 0

    # ---- Weight dropout (loop-invariant): fold the inverted-dropout mask into
    # W_hh once. Eval / __init__ path (F.dropout with training=False) == identity.
    if training and weight_p > 0.0:
        keep = jax.random.bernoulli(key, 1.0 - weight_p, w_hh_raw.shape)
        w_hh_eff = w_hh_raw * (keep.astype(w_hh_raw.dtype) / (1.0 - weight_p))
    else:
        w_hh_eff = w_hh_raw

    # Per-gate, pre-transposed hidden weights: (4, H_in, H_out).
    w_hh_g = jnp.transpose(w_hh_eff.reshape(4, H, H), (0, 2, 1))

    # ---- Input projection for all timesteps as one big MXU matmul (bias folded
    # in). This removes W_ih, the bias and a tiny (B,I)x(I,4H) matmul from the
    # recurrent kernel.  (Done in XLA; it is a plain dense matmul.)
    bias = (b_ih + b_hh).astype(jnp.float32)
    proj = jnp.einsum('tbi,oi->tbo', x, w_ih,
                      preferred_element_type=jnp.float32) + bias     # (T,B,4H)
    xp = proj.reshape(T, B, 4, H).transpose(0, 2, 1, 3)              # (T,4,B,H)

    # Pad T to a multiple of block_t (padded steps compute on zero inputs and
    # are sliced off afterwards).
    n_tb = pl.cdiv(T, block_t)
    T_pad = n_tb * block_t
    if T_pad != T:
        xp = jnp.pad(xp, ((0, T_pad - T), (0, 0), (0, 0), (0, 0)))

    kernel = functools.partial(_lstm_recurrence_kernel, block_t=block_t)

    out = pl.pallas_call(
        kernel,
        out_shape=jax.ShapeDtypeStruct((T_pad, B, H), x.dtype),
        grid_spec=pltpu.PrefetchScalarGridSpec(
            num_scalar_prefetch=0,
            grid=(B // block_b, n_tb),
            in_specs=[
                # precomputed gate pre-activations from x (time-blocked)
                pl.BlockSpec((block_t, 4, block_b, H),
                             lambda b, t: (t, 0, b, 0)),
                # resident per-gate hidden weights (grid-invariant)
                pl.BlockSpec((4, H, H), lambda b, t: (0, 0, 0)),
            ],
            out_specs=pl.BlockSpec((block_t, block_b, H),
                                   lambda b, t: (t, b, 0)),
            scratch_shapes=[
                pltpu.VMEM((block_b, H), jnp.float32),   # h carry
                pltpu.VMEM((block_b, H), jnp.float32),   # c carry
            ],
        ),
        compiler_params=pltpu.CompilerParams(
            dimension_semantics=("parallel", "arbitrary")),
    )(xp, w_hh_g)

    return out[:T]


def _lstm_reference(x, w_ih, w_hh, b_ih, b_hh):
    """Pure-JAX reference matching torch.nn.LSTM gate order."""
    T, B, I = x.shape
    H = w_hh.shape[1]
    h0 = jnp.zeros((B, H), jnp.float32)
    c0 = jnp.zeros((B, H), jnp.float32)

    def step(carry, x_t):
        h, c = carry
        gates = x_t @ w_ih.T + h @ w_hh.T + b_ih + b_hh
        i = jax.nn.sigmoid(gates[:, 0 * H:1 * H])
        f = jax.nn.sigmoid(gates[:, 1 * H:2 * H])
        g = jnp.tanh(gates[:, 2 * H:3 * H])
        o = jax.nn.sigmoid(gates[:, 3 * H:4 * H])
        c = f * c + i * g
        h = o * jnp.tanh(c)
        return (h, c), h

    _, hs = jax.lax.scan(step, (h0, c0), x)
    return hs


if __name__ == "__main__":
    T, B, I, H = 8, 2, 32, 32
    weight_p = 0.5

    key = jax.random.PRNGKey(0)
    kx, k1, k2, k3, k4, kdrop = jax.random.split(key, 6)

    bound = 1.0 / jnp.sqrt(H)
    x = jax.random.normal(kx, (T, B, I), jnp.float32)
    w_ih = jax.random.uniform(k1, (4 * H, I), jnp.float32, -bound, bound)
    w_hh = jax.random.uniform(k2, (4 * H, H), jnp.float32, -bound, bound)
    b_ih = jax.random.uniform(k3, (4 * H,), jnp.float32, -bound, bound)
    b_hh = jax.random.uniform(k4, (4 * H,), jnp.float32, -bound, bound)

    # --- Eval path: forward of WeightDropoutStepwise right after __init__
    # (F.dropout with training=False is the identity → plain LSTM forward).
    out = weight_dropout_lstm(x, w_ih, w_hh, b_ih, b_hh,
                              weight_p=weight_p, training=False, block_t=4)
    out = jax.block_until_ready(out)
    ref = _lstm_reference(x, w_ih, w_hh, b_ih, b_hh)
    assert out.shape == (T, B, H)
    assert jnp.allclose(out, ref, atol=1e-5, rtol=1e-5), "eval mismatch"

    # --- Train path: drop_weights() applies inverted dropout to weight_hh_l0.
    out_tr = weight_dropout_lstm(x, w_ih, w_hh, b_ih, b_hh,
                                 weight_p=weight_p, training=True,
                                 key=kdrop, block_t=4)
    out_tr = jax.block_until_ready(out_tr)
    keep = jax.random.bernoulli(kdrop, 1.0 - weight_p, w_hh.shape)
    w_hh_masked = w_hh * (keep.astype(w_hh.dtype) / (1.0 - weight_p))
    ref_tr = _lstm_reference(x, w_ih, w_hh_masked, b_ih, b_hh)
    assert out_tr.shape == (T, B, H)
    assert jnp.allclose(out_tr, ref_tr, atol=1e-5, rtol=1e-5), "train mismatch"

    print("KERNEL_OK")
</pallas_src>

<mosaic_0001>
module attributes {stable_mosaic.version = 11 : i64} {
  func.func @_lstm_recurrence_kernel(%arg0: i32, %arg1: i32, %arg2: memref<4x4x2x32xf32, #tpu.memory_space<vmem>>, %arg3: memref<4x32x32xf32, #tpu.memory_space<vmem>>, %arg4: memref<4x2x32xf32, #tpu.memory_space<vmem>>, %arg5: memref<2x32xf32, #tpu.memory_space<vmem>>, %arg6: memref<2x32xf32, #tpu.memory_space<vmem>>) attributes {dimension_semantics = [#tpu.dimension_semantics<parallel>, #tpu.dimension_semantics<arbitrary>], iteration_bounds = array<i64: 1, 2>, scalar_prefetch = 0 : i64, scratch_operands = 2 : i64, tpu.core_type = #tpu.core_type<tc>, window_params = [{transform_indices = @transform_0, window_bounds = array<i64: 4, 4, 2, 32>}, {pipeline_mode = #tpu.pipeline_mode<synchronous>, transform_indices = @transform_1, window_bounds = array<i64: 4, 32, 32>}, {transform_indices = @transform_2, window_bounds = array<i64: 4, 2, 32>}]} {
    %c0_i32 = arith.constant 0 : i32
    %0 = arith.cmpi eq, %arg1, %c0_i32 : i32
    %1 = arith.extui %0 : i1 to i32
    %c0_i32_0 = arith.constant 0 : i32
    %2 = arith.cmpi ne, %1, %c0_i32_0 : i32
    scf.if %2 {
      %cst_65 = arith.constant 0.000000e+00 : f32
      %191 = vector.broadcast %cst_65 : f32 to vector<2x32xf32>
      %c0_66 = arith.constant 0 : index
      %c0_67 = arith.constant 0 : index
      %192 = vector.load %arg5[%c0_66, %c0_67] : memref<2x32xf32, #tpu.memory_space<vmem>>, vector<2x32xf32>
      tpu.vector_store %arg5[%c0_66, %c0_67], %191 {strides = array<i32>} : memref<2x32xf32, #tpu.memory_space<vmem>>, vector<2x32xf32>,
      %cst_68 = arith.constant 0.000000e+00 : f32
      %193 = vector.broadcast %cst_68 : f32 to vector<2x32xf32>
      %c0_69 = arith.constant 0 : index
      %c0_70 = arith.constant 0 : index
      %194 = vector.load %arg6[%c0_69, %c0_70] : memref<2x32xf32, #tpu.memory_space<vmem>>, vector<2x32xf32>
      tpu.vector_store %arg6[%c0_69, %c0_70], %193 {strides = array<i32>} : memref<2x32xf32, #tpu.memory_space<vmem>>, vector<2x32xf32>,
    } else {
    }
    %c0 = arith.constant 0 : index
    %c0_1 = arith.constant 0 : index
    %c0_2 = arith.constant 0 : index
    %3 = vector.load %arg3[%c0, %c0_1, %c0_2] : memref<4x32x32xf32, #tpu.memory_space<vmem>>, vector<1x32x32xf32>
    %4 = vector.shape_cast %3 : vector<1x32x32xf32> to vector<32x32xf32>
    %c1 = arith.constant 1 : index
    %c0_3 = arith.constant 0 : index
    %c0_4 = arith.constant 0 : index
    %5 = vector.load %arg3[%c1, %c0_3, %c0_4] : memref<4x32x32xf32, #tpu.memory_space<vmem>>, vector<1x32x32xf32>
    %6 = vector.shape_cast %5 : vector<1x32x32xf32> to vector<32x32xf32>
    %c2 = arith.constant 2 : index
    %c0_5 = arith.constant 0 : index
    %c0_6 = arith.constant 0 : index
    %7 = vector.load %arg3[%c2, %c0_5, %c0_6] : memref<4x32x32xf32, #tpu.memory_space<vmem>>, vector<1x32x32xf32>
    %8 = vector.shape_cast %7 : vector<1x32x32xf32> to vector<32x32xf32>
    %c3 = arith.constant 3 : index
    %c0_7 = arith.constant 0 : index
    %c0_8 = arith.constant 0 : index
    %9 = vector.load %arg3[%c3, %c0_7, %c0_8] : memref<4x32x32xf32, #tpu.memory_space<vmem>>, vector<1x32x32xf32>
    %10 = vector.shape_cast %9 : vector<1x32x32xf32> to vector<32x32xf32>
    %c0_9 = arith.constant 0 : index
    %c0_10 = arith.constant 0 : index
    %11 = vector.load %arg5[%c0_9, %c0_10] : memref<2x32xf32, #tpu.memory_space<vmem>>, vector<2x32xf32>
    %c0_11 = arith.constant 0 : index
    %c0_12 = arith.constant 0 : index
    %12 = vector.load %arg6[%c0_11, %c0_12] : memref<2x32xf32, #tpu.memory_space<vmem>>, vector<2x32xf32>
    %c0_i32_13 = arith.constant 0 : i32
    %13 = arith.index_cast %c0_i32_13 : i32 to index
    %c0_14 = arith.constant 0 : index
    %c0_15 = arith.constant 0 : index
    %c0_16 = arith.constant 0 : index
    %14 = vector.load %arg2[%13, %c0_14, %c0_15, %c0_16] : memref<4x4x2x32xf32, #tpu.memory_space<vmem>>, vector<1x4x2x32xf32>
    %15 = vector.shape_cast %14 : vector<1x4x2x32xf32> to vector<4x2x32xf32>
    %16 = vector.extract_strided_slice %15 {offsets = [0, 0, 0], sizes = [1, 2, 32], strides = [1, 1, 1]} : vector<4x2x32xf32> to vector<1x2x32xf32>
    %17 = vector.shape_cast %16 : vector<1x2x32xf32> to vector<2x32xf32>
    %cst = arith.constant dense<0.000000e+00> : vector<2x32xf32>
    %18 = tpu.matmul %11, %4, %cst {dimension_numbers = #tpu.dot_dimension_numbers<[1], [0], [0], [1], [0, 0, 1, 1], [], []>} : vector<2x32xf32>, vector<32x32xf32>, vector<2x32xf32> -> vector<2x32xf32>
    %19 = arith.addf %17, %18 : vector<2x32xf32>
    %20 = vector.extract_strided_slice %15 {offsets = [1, 0, 0], sizes = [1, 2, 32], strides = [1, 1, 1]} : vector<4x2x32xf32> to vector<1x2x32xf32>
    %21 = vector.shape_cast %20 : vector<1x2x32xf32> to vector<2x32xf32>
    %cst_17 = arith.constant dense<0.000000e+00> : vector<2x32xf32>
    %22 = tpu.matmul %11, %6, %cst_17 {dimension_numbers = #tpu.dot_dimension_numbers<[1], [0], [0], [1], [0, 0, 1, 1], [], []>} : vector<2x32xf32>, vector<32x32xf32>, vector<2x32xf32> -> vector<2x32xf32>
    %23 = arith.addf %21, %22 : vector<2x32xf32>
    %24 = vector.extract_strided_slice %15 {offsets = [2, 0, 0], sizes = [1, 2, 32], strides = [1, 1, 1]} : vector<4x2x32xf32> to vector<1x2x32xf32>
    %25 = vector.shape_cast %24 : vector<1x2x32xf32> to vector<2x32xf32>
    %cst_18 = arith.constant dense<0.000000e+00> : vector<2x32xf32>
    %26 = tpu.matmul %11, %8, %cst_18 {dimension_numbers = #tpu.dot_dimension_numbers<[1], [0], [0], [1], [0, 0, 1, 1], [], []>} : vector<2x32xf32>, vector<32x32xf32>, vector<2x32xf32> -> vector<2x32xf32>
    %27 = arith.addf %25, %26 : vector<2x32xf32>
    %28 = vector.extract_strided_slice %15 {offsets = [3, 0, 0], sizes = [1, 2, 32], strides = [1, 1, 1]} : vector<4x2x32xf32> to vector<1x2x32xf32>
    %29 = vector.shape_cast %28 : vector<1x2x32xf32> to vector<2x32xf32>
    %cst_19 = arith.constant dense<0.000000e+00> : vector<2x32xf32>
    %30 = tpu.matmul %11, %10, %cst_19 {dimension_numbers = #tpu.dot_dimension_numbers<[1], [0], [0], [1], [0, 0, 1, 1], [], []>} : vector<2x32xf32>, vector<32x32xf32>, vector<2x32xf32> -> vector<2x32xf32>
    %31 = arith.addf %29, %30 : vector<2x32xf32>
    %32 = arith.negf %19 : vector<2x32xf32>
    %33 = math.exp %32 : vector<2x32xf32>
    %cst_20 = arith.constant 1.000000e+00 : f32
    %34 = vector.broadcast %cst_20 : f32 to vector<2x32xf32>
    %35 = arith.addf %34, %33 : vector<2x32xf32>
    %36 = arith.divf %34, %35 : vector<2x32xf32>
    %37 = arith.negf %23 : vector<2x32xf32>
    %38 = math.exp %37 : vector<2x32xf32>
    %cst_21 = arith.constant 1.000000e+00 : f32
    %39 = vector.broadcast %cst_21 : f32 to vector<2x32xf32>
    %40 = arith.addf %39, %38 : vector<2x32xf32>
    %41 = arith.divf %39, %40 : vector<2x32xf32>
    %42 = math.tanh %27 : vector<2x32xf32>
    %43 = arith.negf %31 : vector<2x32xf32>
    %44 = math.exp %43 : vector<2x32xf32>
    %cst_22 = arith.constant 1.000000e+00 : f32
    %45 = vector.broadcast %cst_22 : f32 to vector<2x32xf32>
    %46 = arith.addf %45, %44 : vector<2x32xf32>
    %47 = arith.divf %45, %46 : vector<2x32xf32>
    %48 = arith.mulf %41, %12 : vector<2x32xf32>
    %49 = arith.mulf %36, %42 : vector<2x32xf32>
    %50 = arith.addf %48, %49 : vector<2x32xf32>
    %51 = math.tanh %50 : vector<2x32xf32>
    %52 = arith.mulf %47, %51 : vector<2x32xf32>
    %53 = arith.index_cast %c0_i32_13 : i32 to index
    %c0_23 = arith.constant 0 : index
    %c0_24 = arith.constant 0 : index
    %54 = vector.load %arg4[%53, %c0_23, %c0_24] : memref<4x2x32xf32, #tpu.memory_space<vmem>>, vector<1x2x32xf32>
    %55 = vector.shape_cast %54 : vector<1x2x32xf32> to vector<2x32xf32>
    %56 = vector.shape_cast %52 : vector<2x32xf32> to vector<1x2x32xf32>
    tpu.vector_store %arg4[%53, %c0_23, %c0_24], %56 {strides = array<i32>} : memref<4x2x32xf32, #tpu.memory_space<vmem>>, vector<1x2x32xf32>,
    %c1_i32 = arith.constant 1 : i32
    %57 = arith.index_cast %c1_i32 : i32 to index
    %c0_25 = arith.constant 0 : index
    %c0_26 = arith.constant 0 : index
    %c0_27 = arith.constant 0 : index
    %58 = vector.load %arg2[%57, %c0_25, %c0_26, %c0_27] : memref<4x4x2x32xf32, #tpu.memory_space<vmem>>, vector<1x4x2x32xf32>
    %59 = vector.shape_cast %58 : vector<1x4x2x32xf32> to vector<4x2x32xf32>
    %60 = vector.extract_strided_slice %59 {offsets = [0, 0, 0], sizes = [1, 2, 32], strides = [1, 1, 1]} : vector<4x2x32xf32> to vector<1x2x32xf32>
    %61 = vector.shape_cast %60 : vector<1x2x32xf32> to vector<2x32xf32>
    %cst_28 = arith.constant dense<0.000000e+00> : vector<2x32xf32>
    %62 = tpu.matmul %52, %4, %cst_28 {dimension_numbers = #tpu.dot_dimension_numbers<[1], [0], [0], [1], [0, 0, 1, 1], [], []>} : vector<2x32xf32>, vector<32x32xf32>, vector<2x32xf32> -> vector<2x32xf32>
    %63 = arith.addf %61, %62 : vector<2x32xf32>
    %64 = vector.extract_strided_slice %59 {offsets = [1, 0, 0], sizes = [1, 2, 32], strides = [1, 1, 1]} : vector<4x2x32xf32> to vector<1x2x32xf32>
    %65 = vector.shape_cast %64 : vector<1x2x32xf32> to vector<2x32xf32>
    %cst_29 = arith.constant dense<0.000000e+00> : vector<2x32xf32>
    %66 = tpu.matmul %52, %6, %cst_29 {dimension_numbers = #tpu.dot_dimension_numbers<[1], [0], [0], [1], [0, 0, 1, 1], [], []>} : vector<2x32xf32>, vector<32x32xf32>, vector<2x32xf32> -> vector<2x32xf32>
    %67 = arith.addf %65, %66 : vector<2x32xf32>
    %68 = vector.extract_strided_slice %59 {offsets = [2, 0, 0], sizes = [1, 2, 32], strides = [1, 1, 1]} : vector<4x2x32xf32> to vector<1x2x32xf32>
    %69 = vector.shape_cast %68 : vector<1x2x32xf32> to vector<2x32xf32>
    %cst_30 = arith.constant dense<0.000000e+00> : vector<2x32xf32>
    %70 = tpu.matmul %52, %8, %cst_30 {dimension_numbers = #tpu.dot_dimension_numbers<[1], [0], [0], [1], [0, 0, 1, 1], [], []>} : vector<2x32xf32>, vector<32x32xf32>, vector<2x32xf32> -> vector<2x32xf32>
    %71 = arith.addf %69, %70 : vector<2x32xf32>
    %72 = vector.extract_strided_slice %59 {offsets = [3, 0, 0], sizes = [1, 2, 32], strides = [1, 1, 1]} : vector<4x2x32xf32> to vector<1x2x32xf32>
    %73 = vector.shape_cast %72 : vector<1x2x32xf32> to vector<2x32xf32>
    %cst_31 = arith.constant dense<0.000000e+00> : vector<2x32xf32>
    %74 = tpu.matmul %52, %10, %cst_31 {dimension_numbers = #tpu.dot_dimension_numbers<[1], [0], [0], [1], [0, 0, 1, 1], [], []>} : vector<2x32xf32>, vector<32x32xf32>, vector<2x32xf32> -> vector<2x32xf32>
    %75 = arith.addf %73, %74 : vector<2x32xf32>
    %76 = arith.negf %63 : vector<2x32xf32>
    %77 = math.exp %76 : vector<2x32xf32>
    %cst_32 = arith.constant 1.000000e+00 : f32
    %78 = vector.broadcast %cst_32 : f32 to vector<2x32xf32>
    %79 = arith.addf %78, %77 : vector<2x32xf32>
    %80 = arith.divf %78, %79 : vector<2x32xf32>
    %81 = arith.negf %67 : vector<2x32xf32>
    %82 = math.exp %81 : vector<2x32xf32>
    %cst_33 = arith.constant 1.000000e+00 : f32
    %83 = vector.broadcast %cst_33 : f32 to vector<2x32xf32>
    %84 = arith.addf %83, %82 : vector<2x32xf32>
    %85 = arith.divf %83, %84 : vector<2x32xf32>
    %86 = math.tanh %71 : vector<2x32xf32>
    %87 = arith.negf %75 : vector<2x32xf32>
    %88 = math.exp %87 : vector<2x32xf32>
    %cst_34 = arith.constant 1.000000e+00 : f32
    %89 = vector.broadcast %cst_34 : f32 to vector<2x32xf32>
    %90 = arith.addf %89, %88 : vector<2x32xf32>
    %91 = arith.divf %89, %90 : vector<2x32xf32>
    %92 = arith.mulf %85, %50 : vector<2x32xf32>
    %93 = arith.mulf %80, %86 : vector<2x32xf32>
    %94 = arith.addf %92, %93 : vector<2x32xf32>
    %95 = math.tanh %94 : vector<2x32xf32>
    %96 = arith.mulf %91, %95 : vector<2x32xf32>
    %97 = arith.index_cast %c1_i32 : i32 to index
    %c0_35 = arith.constant 0 : index
    %c0_36 = arith.constant 0 : index
    %98 = vector.load %arg4[%97, %c0_35, %c0_36] : memref<4x2x32xf32, #tpu.memory_space<vmem>>, vector<1x2x32xf32>
    %99 = vector.shape_cast %98 : vector<1x2x32xf32> to vector<2x32xf32>
    %100 = vector.shape_cast %96 : vector<2x32xf32> to vector<1x2x32xf32>
    tpu.vector_store %arg4[%97, %c0_35, %c0_36], %100 {strides = array<i32>} : memref<4x2x32xf32, #tpu.memory_space<vmem>>, vector<1x2x32xf32>,
    %c2_i32 = arith.constant 2 : i32
    %101 = arith.index_cast %c2_i32 : i32 to index
    %c0_37 = arith.constant 0 : index
    %c0_38 = arith.constant 0 : index
    %c0_39 = arith.constant 0 : index
    %102 = vector.load %arg2[%101, %c0_37, %c0_38, %c0_39] : memref<4x4x2x32xf32, #tpu.memory_space<vmem>>, vector<1x4x2x32xf32>
    %103 = vector.shape_cast %102 : vector<1x4x2x32xf32> to vector<4x2x32xf32>
    %104 = vector.extract_strided_slice %103 {offsets = [0, 0, 0], sizes = [1, 2, 32], strides = [1, 1, 1]} : vector<4x2x32xf32> to vector<1x2x32xf32>
    %105 = vector.shape_cast %104 : vector<1x2x32xf32> to vector<2x32xf32>
    %cst_40 = arith.constant dense<0.000000e+00> : vector<2x32xf32>
    %106 = tpu.matmul %96, %4, %cst_40 {dimension_numbers = #tpu.dot_dimension_numbers<[1], [0], [0], [1], [0, 0, 1, 1], [], []>} : vector<2x32xf32>, vector<32x32xf32>, vector<2x32xf32> -> vector<2x32xf32>
    %107 = arith.addf %105, %106 : vector<2x32xf32>
    %108 = vector.extract_strided_slice %103 {offsets = [1, 0, 0], sizes = [1, 2, 32], strides = [1, 1, 1]} : vector<4x2x32xf32> to vector<1x2x32xf32>
    %109 = vector.shape_cast %108 : vector<1x2x32xf32> to vector<2x32xf32>
    %cst_41 = arith.constant dense<0.000000e+00> : vector<2x32xf32>
    %110 = tpu.matmul %96, %6, %cst_41 {dimension_numbers = #tpu.dot_dimension_numbers<[1], [0], [0], [1], [0, 0, 1, 1], [], []>} : vector<2x32xf32>, vector<32x32xf32>, vector<2x32xf32> -> vector<2x32xf32>
    %111 = arith.addf %109, %110 : vector<2x32xf32>
    %112 = vector.extract_strided_slice %103 {offsets = [2, 0, 0], sizes = [1, 2, 32], strides = [1, 1, 1]} : vector<4x2x32xf32> to vector<1x2x32xf32>
    %113 = vector.shape_cast %112 : vector<1x2x32xf32> to vector<2x32xf32>
    %cst_42 = arith.constant dense<0.000000e+00> : vector<2x32xf32>
    %114 = tpu.matmul %96, %8, %cst_42 {dimension_numbers = #tpu.dot_dimension_numbers<[1], [0], [0], [1], [0, 0, 1, 1], [], []>} : vector<2x32xf32>, vector<32x32xf32>, vector<2x32xf32> -> vector<2x32xf32>
    %115 = arith.addf %113, %114 : vector<2x32xf32>
    %116 = vector.extract_strided_slice %103 {offsets = [3, 0, 0], sizes = [1, 2, 32], strides = [1, 1, 1]} : vector<4x2x32xf32> to vector<1x2x32xf32>
    %117 = vector.shape_cast %116 : vector<1x2x32xf32> to vector<2x32xf32>
    %cst_43 = arith.constant dense<0.000000e+00> : vector<2x32xf32>
    %118 = tpu.matmul %96, %10, %cst_43 {dimension_numbers = #tpu.dot_dimension_numbers<[1], [0], [0], [1], [0, 0, 1, 1], [], []>} : vector<2x32xf32>, vector<32x32xf32>, vector<2x32xf32> -> vector<2x32xf32>
    %119 = arith.addf %117, %118 : vector<2x32xf32>
    %120 = arith.negf %107 : vector<2x32xf32>
    %121 = math.exp %120 : vector<2x32xf32>
    %cst_44 = arith.constant 1.000000e+00 : f32
    %122 = vector.broadcast %cst_44 : f32 to vector<2x32xf32>
    %123 = arith.addf %122, %121 : vector<2x32xf32>
    %124 = arith.divf %122, %123 : vector<2x32xf32>
    %125 = arith.negf %111 : vector<2x32xf32>
    %126 = math.exp %125 : vector<2x32xf32>
    %cst_45 = arith.constant 1.000000e+00 : f32
    %127 = vector.broadcast %cst_45 : f32 to vector<2x32xf32>
    %128 = arith.addf %127, %126 : vector<2x32xf32>
    %129 = arith.divf %127, %128 : vector<2x32xf32>
    %130 = math.tanh %115 : vector<2x32xf32>
    %131 = arith.negf %119 : vector<2x32xf32>
    %132 = math.exp %131 : vector<2x32xf32>
    %cst_46 = arith.constant 1.000000e+00 : f32
    %133 = vector.broadcast %cst_46 : f32 to vector<2x32xf32>
    %134 = arith.addf %133, %132 : vector<2x32xf32>
    %135 = arith.divf %133, %134 : vector<2x32xf32>
    %136 = arith.mulf %129, %94 : vector<2x32xf32>
    %137 = arith.mulf %124, %130 : vector<2x32xf32>
    %138 = arith.addf %136, %137 : vector<2x32xf32>
    %139 = math.tanh %138 : vector<2x32xf32>
    %140 = arith.mulf %135, %139 : vector<2x32xf32>
    %141 = arith.index_cast %c2_i32 : i32 to index
    %c0_47 = arith.constant 0 : index
    %c0_48 = arith.constant 0 : index
    %142 = vector.load %arg4[%141, %c0_47, %c0_48] : memref<4x2x32xf32, #tpu.memory_space<vmem>>, vector<1x2x32xf32>
    %143 = vector.shape_cast %142 : vector<1x2x32xf32> to vector<2x32xf32>
    %144 = vector.shape_cast %140 : vector<2x32xf32> to vector<1x2x32xf32>
    tpu.vector_store %arg4[%141, %c0_47, %c0_48], %144 {strides = array<i32>} : memref<4x2x32xf32, #tpu.memory_space<vmem>>, vector<1x2x32xf32>,
    %c3_i32 = arith.constant 3 : i32
    %145 = arith.index_cast %c3_i32 : i32 to index
    %c0_49 = arith.constant 0 : index
    %c0_50 = arith.constant 0 : index
    %c0_51 = arith.constant 0 : index
    %146 = vector.load %arg2[%145, %c0_49, %c0_50, %c0_51] : memref<4x4x2x32xf32, #tpu.memory_space<vmem>>, vector<1x4x2x32xf32>
    %147 = vector.shape_cast %146 : vector<1x4x2x32xf32> to vector<4x2x32xf32>
    %148 = vector.extract_strided_slice %147 {offsets = [0, 0, 0], sizes = [1, 2, 32], strides = [1, 1, 1]} : vector<4x2x32xf32> to vector<1x2x32xf32>
    %149 = vector.shape_cast %148 : vector<1x2x32xf32> to vector<2x32xf32>
    %cst_52 = arith.constant dense<0.000000e+00> : vector<2x32xf32>
    %150 = tpu.matmul %140, %4, %cst_52 {dimension_numbers = #tpu.dot_dimension_numbers<[1], [0], [0], [1], [0, 0, 1, 1], [], []>} : vector<2x32xf32>, vector<32x32xf32>, vector<2x32xf32> -> vector<2x32xf32>
    %151 = arith.addf %149, %150 : vector<2x32xf32>
    %152 = vector.extract_strided_slice %147 {offsets = [1, 0, 0], sizes = [1, 2, 32], strides = [1, 1, 1]} : vector<4x2x32xf32> to vector<1x2x32xf32>
    %153 = vector.shape_cast %152 : vector<1x2x32xf32> to vector<2x32xf32>
    %cst_53 = arith.constant dense<0.000000e+00> : vector<2x32xf32>
    %154 = tpu.matmul %140, %6, %cst_53 {dimension_numbers = #tpu.dot_dimension_numbers<[1], [0], [0], [1], [0, 0, 1, 1], [], []>} : vector<2x32xf32>, vector<32x32xf32>, vector<2x32xf32> -> vector<2x32xf32>
    %155 = arith.addf %153, %154 : vector<2x32xf32>
    %156 = vector.extract_strided_slice %147 {offsets = [2, 0, 0], sizes = [1, 2, 32], strides = [1, 1, 1]} : vector<4x2x32xf32> to vector<1x2x32xf32>
    %157 = vector.shape_cast %156 : vector<1x2x32xf32> to vector<2x32xf32>
    %cst_54 = arith.constant dense<0.000000e+00> : vector<2x32xf32>
    %158 = tpu.matmul %140, %8, %cst_54 {dimension_numbers = #tpu.dot_dimension_numbers<[1], [0], [0], [1], [0, 0, 1, 1], [], []>} : vector<2x32xf32>, vector<32x32xf32>, vector<2x32xf32> -> vector<2x32xf32>
    %159 = arith.addf %157, %158 : vector<2x32xf32>
    %160 = vector.extract_strided_slice %147 {offsets = [3, 0, 0], sizes = [1, 2, 32], strides = [1, 1, 1]} : vector<4x2x32xf32> to vector<1x2x32xf32>
    %161 = vector.shape_cast %160 : vector<1x2x32xf32> to vector<2x32xf32>
    %cst_55 = arith.constant dense<0.000000e+00> : vector<2x32xf32>
    %162 = tpu.matmul %140, %10, %cst_55 {dimension_numbers = #tpu.dot_dimension_numbers<[1], [0], [0], [1], [0, 0, 1, 1], [], []>} : vector<2x32xf32>, vector<32x32xf32>, vector<2x32xf32> -> vector<2x32xf32>
    %163 = arith.addf %161, %162 : vector<2x32xf32>
    %164 = arith.negf %151 : vector<2x32xf32>
    %165 = math.exp %164 : vector<2x32xf32>
    %cst_56 = arith.constant 1.000000e+00 : f32
    %166 = vector.broadcast %cst_56 : f32 to vector<2x32xf32>
    %167 = arith.addf %166, %165 : vector<2x32xf32>
    %168 = arith.divf %166, %167 : vector<2x32xf32>
    %169 = arith.negf %155 : vector<2x32xf32>
    %170 = math.exp %169 : vector<2x32xf32>
    %cst_57 = arith.constant 1.000000e+00 : f32
    %171 = vector.broadcast %cst_57 : f32 to vector<2x32xf32>
    %172 = arith.addf %171, %170 : vector<2x32xf32>
    %173 = arith.divf %171, %172 : vector<2x32xf32>
    %174 = math.tanh %159 : vector<2x32xf32>
    %175 = arith.negf %163 : vector<2x32xf32>
    %176 = math.exp %175 : vector<2x32xf32>
    %cst_58 = arith.constant 1.000000e+00 : f32
    %177 = vector.broadcast %cst_58 : f32 to vector<2x32xf32>
    %178 = arith.addf %177, %176 : vector<2x32xf32>
    %179 = arith.divf %177, %178 : vector<2x32xf32>
    %180 = arith.mulf %173, %138 : vector<2x32xf32>
    %181 = arith.mulf %168, %174 : vector<2x32xf32>
    %182 = arith.addf %180, %181 : vector<2x32xf32>
    %183 = math.tanh %182 : vector<2x32xf32>
    %184 = arith.mulf %179, %183 : vector<2x32xf32>
    %185 = arith.index_cast %c3_i32 : i32 to index
    %c0_59 = arith.constant 0 : index
    %c0_60 = arith.constant 0 : index
    %186 = vector.load %arg4[%185, %c0_59, %c0_60] : memref<4x2x32xf32, #tpu.memory_space<vmem>>, vector<1x2x32xf32>
    %187 = vector.shape_cast %186 : vector<1x2x32xf32> to vector<2x32xf32>
    %188 = vector.shape_cast %184 : vector<2x32xf32> to vector<1x2x32xf32>
    tpu.vector_store %arg4[%185, %c0_59, %c0_60], %188 {strides = array<i32>} : memref<4x2x32xf32, #tpu.memory_space<vmem>>, vector<1x2x32xf32>,
    %c4_i32 = arith.constant 4 : i32
    %c0_61 = arith.constant 0 : index
    %c0_62 = arith.constant 0 : index
    %189 = vector.load %arg5[%c0_61, %c0_62] : memref<2x32xf32, #tpu.memory_space<vmem>>, vector<2x32xf32>
    tpu.vector_store %arg5[%c0_61, %c0_62], %184 {strides = array<i32>} : memref<2x32xf32, #tpu.memory_space<vmem>>, vector<2x32xf32>,
    %c0_63 = arith.constant 0 : index
    %c0_64 = arith.constant 0 : index
    %190 = vector.load %arg6[%c0_63, %c0_64] : memref<2x32xf32, #tpu.memory_space<vmem>>, vector<2x32xf32>
    tpu.vector_store %arg6[%c0_63, %c0_64], %182 {strides = array<i32>} : memref<2x32xf32, #tpu.memory_space<vmem>>, vector<2x32xf32>,
    return
  }
  func.func @transform_0(%arg0: i32, %arg1: i32) -> (i32, i32, i32, i32) {
    %c0_i32 = arith.constant 0 : i32
    %c0_i32_0 = arith.constant 0 : i32
    %c0_i32_1 = arith.constant 0 : i32
    return %arg1, %c0_i32, %arg0, %c0_i32_0 : i32, i32, i32, i32
  }
  func.func @transform_1(%arg0: i32, %arg1: i32) -> (i32, i32, i32) {
    %c0_i32 = arith.constant 0 : i32
    %c0_i32_0 = arith.constant 0 : i32
    %c0_i32_1 = arith.constant 0 : i32
    %c0_i32_2 = arith.constant 0 : i32
    return %c0_i32, %c0_i32_0, %c0_i32_1 : i32, i32, i32
  }
  func.func @transform_2(%arg0: i32, %arg1: i32) -> (i32, i32, i32) {
    %c0_i32 = arith.constant 0 : i32
    %c0_i32_0 = arith.constant 0 : i32
    return %arg1, %arg0, %c0_i32 : i32, i32, i32
  }
}

</mosaic_0001>

<llo_original>
// kernel: tpu_custom_call.1
$region0: #{tpu_custom_call.1}
  #allocation0 [shape = 'u32[]', space=smem, size = 0x4, offset = 0x4, fixed_abs, tag = 'smem constant byte address 0x4 - core index']
  #allocation1 [shape = 'u32[144,128]{1,0:T(1,128)}', space=vmem, size = 0x12000, scoped, tag = 'internal scratch']
  #allocation2 [shape = 'f32[2,32]{1,0:T(2,128)}', space=vmem, size = 0x400, scoped, tag = 'scratch operand']
  #allocation3 [shape = 'f32[2,32]{1,0:T(2,128)}', space=vmem, size = 0x400, scoped, tag = 'scratch operand']
  %s0 = inlined_call_operand.hbm [shape: f32[8,4,2,32], index: 0, kind: input, shape index: {}]
  %s1 = inlined_call_operand.hbm [shape: f32[4,32,32], index: 1, kind: input, shape index: {}]
  %s2 = inlined_call_operand.hbm [shape: f32[8,2,32], index: 2, kind: output, shape index: {}]
  %s3 = sld [smem:[#allocation0]]
  $region53: #{tpu_custom_call.1} parent=0
    _
  %s5 = ssub.s32 1, %s3
  %s6 = scalar_select 0, %s5, %s3
  $region1: #{tpu_custom_call.1} parent=0
    #allocation4 [shape = 'u8[32768]{0}', space=vmem, size = 0x8000, scoped, tag = 'input window, operand 0']
    #allocation5 [shape = 's32[2]{0}', space=sflag, size = 0x8, scoped, tag = 'scoped memory for tpu_custom_call.1']
    #allocation6 [shape = 's32[2]{0}', space=sflag, size = 0x8, scoped, tag = 'scoped memory for tpu_custom_call.1']
    #allocation7 [shape = 'u8[65536]{0}', space=vmem, size = 0x10000, scoped, tag = 'input window, operand 1, single buffered']
    #allocation8 [shape = 's32[1]{0}', space=sflag, size = 0x4, scoped, tag = 'scoped memory for tpu_custom_call.1']
    #allocation9 [shape = 'u8[8192]{0}', space=vmem, size = 0x2000, scoped, tag = 'output window, operand 0']
    %7 = vsyncpa [#allocation5], 0
    %s8 = scalar_lea.sflag [#allocation5], 1
    %9 = vsyncpa %s8, 0
    %10 = vsyncpa [#allocation8], 0
    %11 = vsyncpa [#allocation6], 0
    %s12 = scalar_lea.sflag [#allocation6], 1
    %13 = vsyncpa %s12, 0
    loop: start=0, step=1, limit=4
    $region2: #{tpu_custom_call.1} parent=1 // loop_pre_header
      _
    $region3: #{tpu_custom_call.1} parent=1 // loop_header
      %s15 = sphi 0, %s19
      %p16 = scmp.ge.s32.totalorder %s15, 4
      %s22 = sphi 0, %s34
      %s23 = sphi 0, %s30
      %s24 = sphi 0, %s22
      %s25 = sphi 0, %s23
      %s26 = sphi 0, %s24
      %s27 = sphi 0, %s25
      %s39 = sphi 0, %s41
      %s42 = sphi 0, %s39
      %s43 = sphi 0, %s42
      %s59 = sphi 0, %s43
      %s63 = sphi 0, %s63
      %s65 = sphi 0, %s63
      %s66 = sphi 0, %s65
      %s80 = sphi 0, %s66
      %s88 = sphi 0, %s90
      %s91 = sphi 0, %s88
      %s92 = sphi 0, %s91
      %s108 = sphi 0, %s92
    $region4: #{tpu_custom_call.1} parent=1 // loop_header_branch
      %18 = sbr.rel (%p16) target = $region8
    $region5: #{tpu_custom_call.1} parent=1 // loop_body
      %s20 = ssub.s32 %s15, 1
      %s21 = ssub.s32 %s15, 2
      %s28 = sadd.s32 1, %s23
      %p29 = scmp.ge.s32.totalorder %s28, 2
      %s30 = scalar_select %p29, 0, %s28
      %s31 = sadd.s32 1, %s22
      %s32 = scalar_select %p29, %s31, %s22
      %p33 = scmp.ge.s32.totalorder %s32, 1
      %s34 = scalar_select %p33, 0, %s32
      %s35 = ssub.s32 %s23, %s30
      %s36 = ssub.s32 %s22, %s34
      %s37 = sor.u32 %s35, %s36
      %p38 = scmp.eq.s32.totalorder %s37, 0
      %s40 = sadd.s32 %s39, 1
      %s41 = scalar_select %p38, %s39, %s40
      %p44 = pneg %p38
      %p45 = scmp.eq.s32.totalorder %s15, 1
      %p46 = por %p44, %p45
      %p47 = scmp.ne.s32.totalorder %s39, %s42
      %p48 = scmp.eq.s32.totalorder %s15, 0
      %p49 = por %p47, %p48
      %p50 = scmp.ne.s32.totalorder %s39, %s42
      %p51 = scmp.eq.s32.totalorder %s20, 1
      %p52 = por %p50, %p51
      %p53 = scmp.ne.s32.totalorder %s42, %s43
      %p54 = scmp.eq.s32.totalorder %s20, 0
      %p55 = por %p53, %p54
      %p56 = scmp.ne.s32.totalorder %s42, %s43
      %p57 = scmp.eq.s32.totalorder %s21, 1
      %p58 = por %p56, %p57
      %p60 = scmp.ne.s32.totalorder %s43, %s59
      %p61 = scmp.eq.s32.totalorder %s21, 0
      %p62 = por %p60, %p61
      %s64 = sadd.s32 %s63, 1
      %p67 = scmp.eq.s32.totalorder %s15, 1
      %p68 = scmp.ne.s32.totalorder %s63, %s65
      %p69 = scmp.eq.s32.totalorder %s15, 0
      %p70 = por %p68, %p69
      %p71 = scmp.ne.s32.totalorder %s63, %s65
      %p72 = scmp.eq.s32.totalorder %s20, 1
      %p73 = por %p71, %p72
      %p74 = scmp.ne.s32.totalorder %s65, %s66
      %p75 = scmp.eq.s32.totalorder %s20, 0
      %p76 = por %p74, %p75
      %p77 = scmp.ne.s32.totalorder %s65, %s66
      %p78 = scmp.eq.s32.totalorder %s21, 1
      %p79 = por %p77, %p78
      %p81 = scmp.ne.s32.totalorder %s66, %s80
      %p82 = scmp.eq.s32.totalorder %s21, 0
      %p83 = por %p81, %p82
      %s84 = ssub.s32 %s23, %s30
      %s85 = ssub.s32 %s22, %s34
      %s86 = sor.u32 %s84, %s85
      %p87 = scmp.eq.s32.totalorder %s86, 0
      %s89 = sadd.s32 %s88, 1
      %s90 = scalar_select %p87, %s88, %s89
      %p93 = pneg %p87
      %p94 = scmp.eq.s32.totalorder %s15, 1
      %p95 = por %p93, %p94
      %p96 = scmp.ne.s32.totalorder %s88, %s91
      %p97 = scmp.eq.s32.totalorder %s15, 0
      %p98 = por %p96, %p97
      %p99 = scmp.ne.s32.totalorder %s88, %s91
      %p100 = scmp.eq.s32.totalorder %s20, 1
      %p101 = por %p99, %p100
      %p102 = scmp.ne.s32.totalorder %s91, %s92
      %p103 = scmp.eq.s32.totalorder %s20, 0
      %p104 = por %p102, %p103
      %p105 = scmp.ne.s32.totalorder %s91, %s92
      %p106 = scmp.eq.s32.totalorder %s21, 1
      %p107 = por %p105, %p106
      %p109 = scmp.ne.s32.totalorder %s92, %s108
      %p110 = scmp.eq.s32.totalorder %s21, 0
      %p111 = por %p109, %p110
      %p112 = scmp.le.s32.totalorder 1, %s15
      %p113 = scmp.lt.s32.totalorder %s15, 3
      %p114 = pnand %p112, %p113
      %p115 = pneg %p114
      // Predicated region
      $region9: #{tpu_custom_call.1} parent=5 // pred_check
        _
      $region10: #{tpu_custom_call.1} parent=5 // pred_check_branch
        %117 = sbr.rel (%p114) target = $region12
      $region11: #{tpu_custom_call.1} parent=5 // pred_region
        %s118 = ssub.s32 %s15, 1
        // Predicated region
        $region13: #{tpu_custom_call.1} parent=11 // pred_check
          %p119 = pneg %p76
        $region14: #{tpu_custom_call.1} parent=11 // pred_check_branch
          %121 = sbr.rel (%p119) target = $region16
        $region15: #{tpu_custom_call.1} parent=11 // pred_region
          %s123 = ssub.s32 2048, 2048
          %124 = vsyncadd [#allocation8], %s123
          %s125 = sshll.u32 [#allocation7], 4
          %s126 = int_to_ptr.vmem [resolvable:$true] %s125
          %131 = dma.hbm_to_vmem [thread:$0]  %s1, 2048, %s126, [#allocation8], 128, 128, 8
        $region16: #{tpu_custom_call.1} parent=11 // pred_fallthru
          _
      $region12: #{tpu_custom_call.1} parent=5 // pred_fallthru
        _
      %p132 = scmp.lt.s32.totalorder %s15, 2
      // Predicated region
      $region17: #{tpu_custom_call.1} parent=5 // pred_check
        %p133 = pneg %p132
      $region18: #{tpu_custom_call.1} parent=5 // pred_check_branch
        %135 = sbr.rel (%p133) target = $region20
      $region19: #{tpu_custom_call.1} parent=5 // pred_region
        // Predicated region
        $region21: #{tpu_custom_call.1} parent=19 // pred_check
          %p136 = pneg %p49
        $region22: #{tpu_custom_call.1} parent=19 // pred_check_branch
          %138 = sbr.rel (%p136) target = $region24
        $region23: #{tpu_custom_call.1} parent=19 // pred_region
          %s139 = sand.u32 %s39, 1
          %s140 = scalar_lea.sflag [#allocation5], %s139
          %s141 = sand.u32 %s39, 1
          %s142 = smul.addr %s141, 32
          %s143 = scalar_lea.vmem [#allocation4], %s142
          %s144 = smul.u32 4, %s23
          %s146 = ssub.s32 512, 512
          %147 = vsyncadd %s140, %s146
          %s148 = smul.addr %s144, 4
          %s149 = sadd.s32 %s22, %s148
          %s150 = smul.addr %s149, 32
          %s151 = scalar_lea.hbm %s0, %s150
          %s152 = sshll.u32 %s143, 4
          %s153 = int_to_ptr.vmem [resolvable:$true] %s152
          %158 = dma.hbm_to_vmem [thread:$0]  %s151, 512, %s153, %s140, 32, 32, 2
        $region24: #{tpu_custom_call.1} parent=19 // pred_fallthru
          _
      $region20: #{tpu_custom_call.1} parent=5 // pred_fallthru
        _
      %p159 = scmp.le.s32.totalorder 1, %s15
      %p160 = scmp.lt.s32.totalorder %s15, 3
      %p161 = pnand %p159, %p160
      %p162 = pneg %p161
      // Predicated region
      $region25: #{tpu_custom_call.1} parent=5 // pred_check
        _
      $region26: #{tpu_custom_call.1} parent=5 // pred_check_branch
        %164 = sbr.rel (%p161) target = $region28
      $region27: #{tpu_custom_call.1} parent=5 // pred_region
        %s165 = ssub.s32 %s15, 1
        %s166 = sand.u32 %s42, 1
        %s167 = scalar_lea.sflag [#allocation5], %s166
        %s168 = sand.u32 %s42, 1
        %s169 = smul.addr %s168, 32
        %s170 = scalar_lea.vmem [#allocation4], %s169
        // Predicated region
        $region29: #{tpu_custom_call.1} parent=27 // pred_check
          %p171 = pneg %p55
        $region30: #{tpu_custom_call.1} parent=27 // pred_check_branch
          %173 = sbr.rel (%p171) target = $region32
        $region31: #{tpu_custom_call.1} parent=27 // pred_region
          %174 = dma.done %s167, 512
        $region32: #{tpu_custom_call.1} parent=27 // pred_fallthru
          _
        // Predicated region
        $region33: #{tpu_custom_call.1} parent=27 // pred_check
          %p175 = pneg %p76
        $region34: #{tpu_custom_call.1} parent=27 // pred_check_branch
          %177 = sbr.rel (%p175) target = $region36
        $region35: #{tpu_custom_call.1} parent=27 // pred_region
          %178 = dma.done [#allocation8], 2048
        $region36: #{tpu_custom_call.1} parent=27 // pred_fallthru
          _
        %s179 = sand.u32 %s42, 1
        %s180 = scalar_lea.sflag [#allocation5], %s179
        %s181 = sand.u32 %s42, 1
        %s182 = smul.addr %s181, 32
        %s183 = scalar_lea.vmem [#allocation4], %s182
        %p184 = pneg %p55
        %p185 = pneg %p52
        %p186 = pneg %p76
        %p187 = pneg %p73
        %p188 = pneg %p104
        %p189 = pneg %p101
        %s190 = sand.u32 %s91, 1
        %s191 = scalar_lea.sflag [#allocation6], %s190
        %s192 = sand.u32 %s91, 1
        %s193 = smul.addr %s192, 8
        %s194 = scalar_lea.vmem [#allocation9], %s193
        %s195 = smul.u32 4, %s25
        %s196 = smul.u32 4, %s25
        %p197 = scmp.eq.s32.totalorder %s25, 0
        // Predicated region
        $region37: #{tpu_custom_call.1} parent=27 // pred_check
          %p198 = pneg %p197
        $region38: #{tpu_custom_call.1} parent=27 // pred_check_branch
          %200 = sbr.rel (%p198) target = $region40
        $region39: #{tpu_custom_call.1} parent=27 // pred_region
          %vm201 = vcmask 254976
          %202 = vst.msk [vmem:[#allocation2] sm:$0x3] %vm201, 0.0
          %203 = vst.msk [vmem:[#allocation3] sm:$0x3] %vm201, 0.0
        $region40: #{tpu_custom_call.1} parent=27 // pred_fallthru
          _
        %v204 = vld [vmem:[#allocation7] sm:$0xff]
        %v205 = vld [vmem:[#allocation7 + $0x8] sm:$0xff]
        %v206 = vld [vmem:[#allocation7 + $0x10] sm:$0xff]
        %v207 = vld [vmem:[#allocation7 + $0x18] sm:$0xff]
        %s208 = scalar_lea.vmem [#allocation7], 32
        %v209 = vld [vmem:[%s208] sm:$0xff]
        %v210 = vld [vmem:[%s208 + $0x8] sm:$0xff]
        %v211 = vld [vmem:[%s208 + $0x10] sm:$0xff]
        %v212 = vld [vmem:[%s208 + $0x18] sm:$0xff]
        %s213 = scalar_lea.vmem [#allocation7], 64
        %v214 = vld [vmem:[%s213] sm:$0xff]
        %v215 = vld [vmem:[%s213 + $0x8] sm:$0xff]
        %v216 = vld [vmem:[%s213 + $0x10] sm:$0xff]
        %v217 = vld [vmem:[%s213 + $0x18] sm:$0xff]
        %s218 = scalar_lea.vmem [#allocation7], 96
        %v219 = vld [vmem:[%s218] sm:$0xff]
        %v220 = vld [vmem:[%s218 + $0x8] sm:$0xff]
        %v221 = vld [vmem:[%s218 + $0x10] sm:$0xff]
        %v222 = vld [vmem:[%s218 + $0x18] sm:$0xff]
        %v223 = vld [vmem:[#allocation2] sm:$0x3]
        %v224 = vld [vmem:[#allocation3] sm:$0x3]
        %v225 = vld [vmem:[%s170] sm:$0x3]
        %v226 = vld [vmem:[%s170 + $0x2] sm:$0x3]
        %v227 = vld [vmem:[%s170 + $0x4] sm:$0x3]
        %v228 = vld [vmem:[%s170 + $0x6] sm:$0x3]
        %vm229 = vcmask 261120
        %v231 = vsel %vm229, %v223, 0
        %233 = vmatprep.subr.mxu0 0.0
        %234 = vmatpush1.msra.mxu0 %v204
        %235 = vmatprep.subr.mxu0 0.0
        %236 = vmatpush1.msra.mxu0 %v205
        %237 = vmatprep.subr.mxu0 0.0
        %238 = vmatpush1.msra.mxu0 %v206
        %239 = vmatprep.subr.mxu0 0.0
        %240 = vmatpush1.msra.mxu0 %v207
        %241 = vmatprep.subr.mxu0 0.0
        %242 = vmatpush1.msra.mxu0 0.0
        %243 = vmatprep.subr.mxu0 0.0
        %244 = vmatpush1.msra.mxu0 0.0
        %245 = vmatprep.subr.mxu0 0.0
        %246 = vmatpush1.msra.mxu0 0.0
        %247 = vmatprep.subr.mxu0 0.0
        %248 = vmatpush1.msra.mxu0 0.0
        %249 = vmatprep.subr.mxu0 0.0
        %250 = vmatpush1.msra.mxu0 0.0
        %251 = vmatprep.subr.mxu0 0.0
        %252 = vmatpush1.msra.mxu0 0.0
        %253 = vmatprep.subr.mxu0 0.0
        %254 = vmatpush1.msra.mxu0 0.0
        %255 = vmatprep.subr.mxu0 0.0
        %256 = vmatpush1.msra.mxu0 0.0
        %257 = vmatprep.subr.mxu0 0.0
        %258 = vmatpush1.msra.mxu0 0.0
        %259 = vmatprep.subr.mxu0 0.0
        %260 = vmatpush1.msra.mxu0 0.0
        %261 = vmatprep.subr.mxu0 0.0
        %262 = vmatpush1.msra.mxu0 0.0
        %263 = vmatprep.subr.mxu0 0.0
        %264 = vmatpush1.msra.mxu0 0.0
        %265 = vmatprep.subr.mxu0 0.0
        %266 = vmatpush1.msra.mxu0 0.0
        %267 = vmatprep.subr.mxu0 0.0
        %268 = vmatpush1.msra.mxu0 0.0
        %269 = vmatprep.subr.mxu0 0.0
        %270 = vmatpush1.msra.mxu0 0.0
        %271 = vmatprep.subr.mxu0 0.0
        %272 = vmatpush1.msra.mxu0 0.0
        %273 = vmatprep.subr.mxu0 0.0
        %274 = vmatpush1.msra.mxu0 0.0
        %275 = vmatprep.subr.mxu0 0.0
        %276 = vmatpush1.msra.mxu0 0.0
        %277 = vmatprep.subr.mxu0 0.0
        %278 = vmatpush1.msra.mxu0 0.0
        %279 = vmatprep.subr.mxu0 0.0
        %280 = vmatpush1.msra.mxu0 0.0
        %281 = vmatprep.subr.mxu0 0.0
        %282 = vmatpush1.msra.mxu0 0.0
        %283 = vmatprep.subr.mxu0 0.0
        %284 = vmatpush1.msra.mxu0 0.0
        %285 = vmatprep.subr.mxu0 0.0
        %286 = vmatpush1.msra.mxu0 0.0
        %287 = vmatprep.subr.mxu0 0.0
        %288 = vmatpush1.msra.mxu0 0.0
        %289 = vmatprep.subr.mxu0 0.0
        %290 = vmatpush1.msra.mxu0 0.0
        %291 = vmatprep.subr.mxu0 0.0
        %292 = vmatpush1.msra.mxu0 0.0
        %293 = vmatprep.subr.mxu0 0.0
        %294 = vmatpush1.msra.mxu0 0.0
        %295 = vmatprep.subr.mxu0 0.0
        %296 = vmatpush1.msra.mxu0 0.0
        %297 = vmatprep.mubr.f32.mxu0 0.0
        %298 = vmatmul.mubr.f32.gmra.mrb[0].mxu0 %v231
        %v299 = vpop.f32.mrb[0].mxu0
        %v300 = vadd.f32 0.0, %v299
        %v301 = vpop.f32.mrb[0].mxu0
        %302 = vdwg.mxu0
        %v303 = vadd.f32 %v225, %v300
        %304 = vmatprep.subr.mxu0 0.0
        %305 = vmatpush1.msra.mxu0 %v209
        %306 = vmatprep.subr.mxu0 0.0
        %307 = vmatpush1.msra.mxu0 %v210
        %308 = vmatprep.subr.mxu0 0.0
        %309 = vmatpush1.msra.mxu0 %v211
        %310 = vmatprep.subr.mxu0 0.0
        %311 = vmatpush1.msra.mxu0 %v212
        %312 = vmatprep.subr.mxu0 0.0
        %313 = vmatpush1.msra.mxu0 0.0
        %314 = vmatprep.subr.mxu0 0.0
        %315 = vmatpush1.msra.mxu0 0.0
        %316 = vmatprep.subr.mxu0 0.0
        %317 = vmatpush1.msra.mxu0 0.0
        %318 = vmatprep.subr.mxu0 0.0
        %319 = vmatpush1.msra.mxu0 0.0
        %320 = vmatprep.subr.mxu0 0.0
        %321 = vmatpush1.msra.mxu0 0.0
        %322 = vmatprep.subr.mxu0 0.0
        %323 = vmatpush1.msra.mxu0 0.0
        %324 = vmatprep.subr.mxu0 0.0
        %325 = vmatpush1.msra.mxu0 0.0
        %326 = vmatprep.subr.mxu0 0.0
        %327 = vmatpush1.msra.mxu0 0.0
        %328 = vmatprep.subr.mxu0 0.0
        %329 = vmatpush1.msra.mxu0 0.0
        %330 = vmatprep.subr.mxu0 0.0
        %331 = vmatpush1.msra.mxu0 0.0
        %332 = vmatprep.subr.mxu0 0.0
        %333 = vmatpush1.msra.mxu0 0.0
        %334 = vmatprep.subr.mxu0 0.0
        %335 = vmatpush1.msra.mxu0 0.0
        %336 = vmatprep.subr.mxu0 0.0
        %337 = vmatpush1.msra.mxu0 0.0
        %338 = vmatprep.subr.mxu0 0.0
        %339 = vmatpush1.msra.mxu0 0.0
        %340 = vmatprep.subr.mxu0 0.0
        %341 = vmatpush1.msra.mxu0 0.0
        %342 = vmatprep.subr.mxu0 0.0
        %343 = vmatpush1.msra.mxu0 0.0
        %344 = vmatprep.subr.mxu0 0.0
        %345 = vmatpush1.msra.mxu0 0.0
        %346 = vmatprep.subr.mxu0 0.0
        %347 = vmatpush1.msra.mxu0 0.0
        %348 = vmatprep.subr.mxu0 0.0
        %349 = vmatpush1.msra.mxu0 0.0
        %350 = vmatprep.subr.mxu0 0.0
        %351 = vmatpush1.msra.mxu0 0.0
        %352 = vmatprep.subr.mxu0 0.0
        %353 = vmatpush1.msra.mxu0 0.0
        %354 = vmatprep.subr.mxu0 0.0
        %355 = vmatpush1.msra.mxu0 0.0
        %356 = vmatprep.subr.mxu0 0.0
        %357 = vmatpush1.msra.mxu0 0.0
        %358 = vmatprep.subr.mxu0 0.0
        %359 = vmatpush1.msra.mxu0 0.0
        %360 = vmatprep.subr.mxu0 0.0
        %361 = vmatpush1.msra.mxu0 0.0
        %362 = vmatprep.subr.mxu0 0.0
        %363 = vmatpush1.msra.mxu0 0.0
        %364 = vmatprep.subr.mxu0 0.0
        %365 = vmatpush1.msra.mxu0 0.0
        %366 = vmatprep.subr.mxu0 0.0
        %367 = vmatpush1.msra.mxu0 0.0
        %368 = vmatprep.mubr.f32.mxu0 0.0
        %369 = vmatmul.mubr.f32.gmra.mrb[0].mxu0 %v231
        %v370 = vpop.f32.mrb[0].mxu0
        %v371 = vadd.f32 0.0, %v370
        %v372 = vpop.f32.mrb[0].mxu0
        %373 = vdwg.mxu0
        %v374 = vadd.f32 %v226, %v371
        %375 = vmatprep.subr.mxu0 0.0
        %376 = vmatpush1.msra.mxu0 %v214
        %377 = vmatprep.subr.mxu0 0.0
        %378 = vmatpush1.msra.mxu0 %v215
        %379 = vmatprep.subr.mxu0 0.0
        %380 = vmatpush1.msra.mxu0 %v216
        %381 = vmatprep.subr.mxu0 0.0
        %382 = vmatpush1.msra.mxu0 %v217
        %383 = vmatprep.subr.mxu0 0.0
        %384 = vmatpush1.msra.mxu0 0.0
        %385 = vmatprep.subr.mxu0 0.0
        %386 = vmatpush1.msra.mxu0 0.0
        %387 = vmatprep.subr.mxu0 0.0
        %388 = vmatpush1.msra.mxu0 0.0
        %389 = vmatprep.subr.mxu0 0.0
        %390 = vmatpush1.msra.mxu0 0.0
        %391 = vmatprep.subr.mxu0 0.0
        %392 = vmatpush1.msra.mxu0 0.0
        %393 = vmatprep.subr.mxu0 0.0
        %394 = vmatpush1.msra.mxu0 0.0
        %395 = vmatprep.subr.mxu0 0.0
        %396 = vmatpush1.msra.mxu0 0.0
        %397 = vmatprep.subr.mxu0 0.0
        %398 = vmatpush1.msra.mxu0 0.0
        %399 = vmatprep.subr.mxu0 0.0
        %400 = vmatpush1.msra.mxu0 0.0
        %401 = vmatprep.subr.mxu0 0.0
        %402 = vmatpush1.msra.mxu0 0.0
        %403 = vmatprep.subr.mxu0 0.0
        %404 = vmatpush1.msra.mxu0 0.0
        %405 = vmatprep.subr.mxu0 0.0
        %406 = vmatpush1.msra.mxu0 0.0
        %407 = vmatprep.subr.mxu0 0.0
        %408 = vmatpush1.msra.mxu0 0.0
        %409 = vmatprep.subr.mxu0 0.0
        %410 = vmatpush1.msra.mxu0 0.0
        %411 = vmatprep.subr.mxu0 0.0
        %412 = vmatpush1.msra.mxu0 0.0
        %413 = vmatprep.subr.mxu0 0.0
        %414 = vmatpush1.msra.mxu0 0.0
        %415 = vmatprep.subr.mxu0 0.0
        %416 = vmatpush1.msra.mxu0 0.0
        %417 = vmatprep.subr.mxu0 0.0
        %418 = vmatpush1.msra.mxu0 0.0
        %419 = vmatprep.subr.mxu0 0.0
        %420 = vmatpush1.msra.mxu0 0.0
        %421 = vmatprep.subr.mxu0 0.0
        %422 = vmatpush1.msra.mxu0 0.0
        %423 = vmatprep.subr.mxu0 0.0
        %424 = vmatpush1.msra.mxu0 0.0
        %425 = vmatprep.subr.mxu0 0.0
        %426 = vmatpush1.msra.mxu0 0.0
        %427 = vmatprep.subr.mxu0 0.0
        %428 = vmatpush1.msra.mxu0 0.0
        %429 = vmatprep.subr.mxu0 0.0
        %430 = vmatpush1.msra.mxu0 0.0
        %431 = vmatprep.subr.mxu0 0.0
        %432 = vmatpush1.msra.mxu0 0.0
        %433 = vmatprep.subr.mxu0 0.0
        %434 = vmatpush1.msra.mxu0 0.0
        %435 = vmatprep.subr.mxu0 0.0
        %436 = vmatpush1.msra.mxu0 0.0
        %437 = vmatprep.subr.mxu0 0.0
        %438 = vmatpush1.msra.mxu0 0.0
        %439 = vmatprep.mubr.f32.mxu0 0.0
        %440 = vmatmul.mubr.f32.gmra.mrb[0].mxu0 %v231
        %v441 = vpop.f32.mrb[0].mxu0
        %v442 = vadd.f32 0.0, %v441
        %v443 = vpop.f32.mrb[0].mxu0
        %444 = vdwg.mxu0
        %v445 = vadd.f32 %v227, %v442
        %446 = vmatprep.subr.mxu0 0.0
        %447 = vmatpush1.msra.mxu0 %v219
        %448 = vmatprep.subr.mxu0 0.0
        %449 = vmatpush1.msra.mxu0 %v220
        %450 = vmatprep.subr.mxu0 0.0
        %451 = vmatpush1.msra.mxu0 %v221
        %452 = vmatprep.subr.mxu0 0.0
        %453 = vmatpush1.msra.mxu0 %v222
        %454 = vmatprep.subr.mxu0 0.0
        %455 = vmatpush1.msra.mxu0 0.0
        %456 = vmatprep.subr.mxu0 0.0
        %457 = vmatpush1.msra.mxu0 0.0
        %458 = vmatprep.subr.mxu0 0.0
        %459 = vmatpush1.msra.mxu0 0.0
        %460 = vmatprep.subr.mxu0 0.0
        %461 = vmatpush1.msra.mxu0 0.0
        %462 = vmatprep.subr.mxu0 0.0
        %463 = vmatpush1.msra.mxu0 0.0
        %464 = vmatprep.subr.mxu0 0.0
        %465 = vmatpush1.msra.mxu0 0.0
        %466 = vmatprep.subr.mxu0 0.0
        %467 = vmatpush1.msra.mxu0 0.0
        %468 = vmatprep.subr.mxu0 0.0
        %469 = vmatpush1.msra.mxu0 0.0
        %470 = vmatprep.subr.mxu0 0.0
        %471 = vmatpush1.msra.mxu0 0.0
        %472 = vmatprep.subr.mxu0 0.0
        %473 = vmatpush1.msra.mxu0 0.0
        %474 = vmatprep.subr.mxu0 0.0
        %475 = vmatpush1.msra.mxu0 0.0
        %476 = vmatprep.subr.mxu0 0.0
        %477 = vmatpush1.msra.mxu0 0.0
        %478 = vmatprep.subr.mxu0 0.0
        %479 = vmatpush1.msra.mxu0 0.0
        %480 = vmatprep.subr.mxu0 0.0
        %481 = vmatpush1.msra.mxu0 0.0
        %482 = vmatprep.subr.mxu0 0.0
        %483 = vmatpush1.msra.mxu0 0.0
        %484 = vmatprep.subr.mxu0 0.0
        %485 = vmatpush1.msra.mxu0 0.0
        %486 = vmatprep.subr.mxu0 0.0
        %487 = vmatpush1.msra.mxu0 0.0
        %488 = vmatprep.subr.mxu0 0.0
        %489 = vmatpush1.msra.mxu0 0.0
        %490 = vmatprep.subr.mxu0 0.0
        %491 = vmatpush1.msra.mxu0 0.0
        %492 = vmatprep.subr.mxu0 0.0
        %493 = vmatpush1.msra.mxu0 0.0
        %494 = vmatprep.subr.mxu0 0.0
        %495 = vmatpush1.msra.mxu0 0.0
        %496 = vmatprep.subr.mxu0 0.0
        %497 = vmatpush1.msra.mxu0 0.0
        %498 = vmatprep.subr.mxu0 0.0
        %499 = vmatpush1.msra.mxu0 0.0
        %500 = vmatprep.subr.mxu0 0.0
        %501 = vmatpush1.msra.mxu0 0.0
        %502 = vmatprep.subr.mxu0 0.0
        %503 = vmatpush1.msra.mxu0 0.0
        %504 = vmatprep.subr.mxu0 0.0
        %505 = vmatpush1.msra.mxu0 0.0
        %506 = vmatprep.subr.mxu0 0.0
        %507 = vmatpush1.msra.mxu0 0.0
        %508 = vmatprep.subr.mxu0 0.0
        %509 = vmatpush1.msra.mxu0 0.0
        %510 = vmatprep.mubr.f32.mxu0 0.0
        %511 = vmatmul.mubr.f32.gmra.mrb[0].mxu0 %v231
        %v512 = vpop.f32.mrb[0].mxu0
        %v513 = vadd.f32 0.0, %v512
        %v514 = vpop.f32.mrb[0].mxu0
        %515 = vdwg.mxu0
        %v516 = vadd.f32 %v228, %v513
        %v517 = vxor.u32 %v303, 2147483648
        %v518 = vmul.f32 %v517, 1.442695
        %v519 = vpow.pop %v518
        %v520 = vadd.f32 %v519, 1.0
        %v521 = vrcp.pop %v520
        %v522 = vmul.f32 1.0, %v521
        %v523 = vxor.u32 %v374, 2147483648
        %v524 = vmul.f32 %v523, 1.442695
        %v525 = vpow.pop %v524
        %v526 = vadd.f32 %v525, 1.0
        %v527 = vrcp.pop %v526
        %v528 = vmul.f32 1.0, %v527
        %v529 = vtanh.pop %v445
        %v530 = vxor.u32 %v516, 2147483648
        %v531 = vmul.f32 %v530, 1.442695
        %v532 = vpow.pop %v531
        %v533 = vadd.f32 %v532, 1.0
        %v534 = vrcp.pop %v533
        %v535 = vmul.f32 1.0, %v534
        %v536 = vmul.f32 %v528, %v224
        %v537 = vmul.f32 %v522, %v529
        %v538 = vadd.f32 %v536, %v537
        %v539 = vtanh.pop %v538
        %v540 = vmul.f32 %v535, %v539
        %vm541 = vcmask 254976
        %542 = vst.msk [vmem:[%s194] sm:$0x3] %vm541, %v540
        %s543 = scalar_lea.vmem %s170, 8 [#allocation4]
        %v544 = vld [vmem:[%s543] sm:$0x3]
        %v545 = vld [vmem:[%s543 + $0x2] sm:$0x3]
        %v546 = vld [vmem:[%s543 + $0x4] sm:$0x3]
        %v547 = vld [vmem:[%s543 + $0x6] sm:$0x3]
        %v549 = vsel %vm229, %v540, 0
        %551 = vmatprep.subr.mxu0 0.0
        %552 = vmatpush1.msra.mxu0 %v204
        %553 = vmatprep.subr.mxu0 0.0
        %554 = vmatpush1.msra.mxu0 %v205
        %555 = vmatprep.subr.mxu0 0.0
        %556 = vmatpush1.msra.mxu0 %v206
        %557 = vmatprep.subr.mxu0 0.0
        %558 = vmatpush1.msra.mxu0 %v207
        %559 = vmatprep.subr.mxu0 0.0
        %560 = vmatpush1.msra.mxu0 0.0
        %561 = vmatprep.subr.mxu0 0.0
        %562 = vmatpush1.msra.mxu0 0.0
        %563 = vmatprep.subr.mxu0 0.0
        %564 = vmatpush1.msra.mxu0 0.0
        %565 = vmatprep.subr.mxu0 0.0
        %566 = vmatpush1.msra.mxu0 0.0
        %567 = vmatprep.subr.mxu0 0.0
        %568 = vmatpush1.msra.mxu0 0.0
        %569 = vmatprep.subr.mxu0 0.0
        %570 = vmatpush1.msra.mxu0 0.0
        %571 = vmatprep.subr.mxu0 0.0
        %572 = vmatpush1.msra.mxu0 0.0
        %573 = vmatprep.subr.mxu0 0.0
        %574 = vmatpush1.msra.mxu0 0.0
        %575 = vmatprep.subr.mxu0 0.0
        %576 = vmatpush1.msra.mxu0 0.0
        %577 = vmatprep.subr.mxu0 0.0
        %578 = vmatpush1.msra.mxu0 0.0
        %579 = vmatprep.subr.mxu0 0.0
        %580 = vmatpush1.msra.mxu0 0.0
        %581 = vmatprep.subr.mxu0 0.0
        %582 = vmatpush1.msra.mxu0 0.0
        %583 = vmatprep.subr.mxu0 0.0
        %584 = vmatpush1.msra.mxu0 0.0
        %585 = vmatprep.subr.mxu0 0.0
        %586 = vmatpush1.msra.mxu0 0.0
        %587 = vmatprep.subr.mxu0 0.0
        %588 = vmatpush1.msra.mxu0 0.0
        %589 = vmatprep.subr.mxu0 0.0
        %590 = vmatpush1.msra.mxu0 0.0
        %591 = vmatprep.subr.mxu0 0.0
        %592 = vmatpush1.msra.mxu0 0.0
        %593 = vmatprep.subr.mxu0 0.0
        %594 = vmatpush1.msra.mxu0 0.0
        %595 = vmatprep.subr.mxu0 0.0
        %596 = vmatpush1.msra.mxu0 0.0
        %597 = vmatprep.subr.mxu0 0.0
        %598 = vmatpush1.msra.mxu0 0.0
        %599 = vmatprep.subr.mxu0 0.0
        %600 = vmatpush1.msra.mxu0 0.0
        %601 = vmatprep.subr.mxu0 0.0
        %602 = vmatpush1.msra.mxu0 0.0
        %603 = vmatprep.subr.mxu0 0.0
        %604 = vmatpush1.msra.mxu0 0.0
        %605 = vmatprep.subr.mxu0 0.0
        %606 = vmatpush1.msra.mxu0 0.0
        %607 = vmatprep.subr.mxu0 0.0
        %608 = vmatpush1.msra.mxu0 0.0
        %609 = vmatprep.subr.mxu0 0.0
        %610 = vmatpush1.msra.mxu0 0.0
        %611 = vmatprep.subr.mxu0 0.0
        %612 = vmatpush1.msra.mxu0 0.0
        %613 = vmatprep.subr.mxu0 0.0
        %614 = vmatpush1.msra.mxu0 0.0
        %615 = vmatprep.mubr.f32.mxu0 0.0
        %616 = vmatmul.mubr.f32.gmra.mrb[0].mxu0 %v549
        %v617 = vpop.f32.mrb[0].mxu0
        %v618 = vadd.f32 0.0, %v617
        %v619 = vpop.f32.mrb[0].mxu0
        %620 = vdwg.mxu0
        %v621 = vadd.f32 %v544, %v618
        %622 = vmatprep.subr.mxu0 0.0
        %623 = vmatpush1.msra.mxu0 %v209
        %624 = vmatprep.subr.mxu0 0.0
        %625 = vmatpush1.msra.mxu0 %v210
        %626 = vmatprep.subr.mxu0 0.0
        %627 = vmatpush1.msra.mxu0 %v211
        %628 = vmatprep.subr.mxu0 0.0
        %629 = vmatpush1.msra.mxu0 %v212
        %630 = vmatprep.subr.mxu0 0.0
        %631 = vmatpush1.msra.mxu0 0.0
        %632 = vmatprep.subr.mxu0 0.0
        %633 = vmatpush1.msra.mxu0 0.0
        %634 = vmatprep.subr.mxu0 0.0
        %635 = vmatpush1.msra.mxu0 0.0
        %636 = vmatprep.subr.mxu0 0.0
        %637 = vmatpush1.msra.mxu0 0.0
        %638 = vmatprep.subr.mxu0 0.0
        %639 = vmatpush1.msra.mxu0 0.0
        %640 = vmatprep.subr.mxu0 0.0
        %641 = vmatpush1.msra.mxu0 0.0
        %642 = vmatprep.subr.mxu0 0.0
        %643 = vmatpush1.msra.mxu0 0.0
        %644 = vmatprep.subr.mxu0 0.0
        %645 = vmatpush1.msra.mxu0 0.0
        %646 = vmatprep.subr.mxu0 0.0
        %647 = vmatpush1.msra.mxu0 0.0
        %648 = vmatprep.subr.mxu0 0.0
        %649 = vmatpush1.msra.mxu0 0.0
        %650 = vmatprep.subr.mxu0 0.0
        %651 = vmatpush1.msra.mxu0 0.0
        %652 = vmatprep.subr.mxu0 0.0
        %653 = vmatpush1.msra.mxu0 0.0
        %654 = vmatprep.subr.mxu0 0.0
        %655 = vmatpush1.msra.mxu0 0.0
        %656 = vmatprep.subr.mxu0 0.0
        %657 = vmatpush1.msra.mxu0 0.0
        %658 = vmatprep.subr.mxu0 0.0
        %659 = vmatpush1.msra.mxu0 0.0
        %660 = vmatprep.subr.mxu0 0.0
        %661 = vmatpush1.msra.mxu0 0.0
        %662 = vmatprep.subr.mxu0 0.0
        %663 = vmatpush1.msra.mxu0 0.0
        %664 = vmatprep.subr.mxu0 0.0
        %665 = vmatpush1.msra.mxu0 0.0
        %666 = vmatprep.subr.mxu0 0.0
        %667 = vmatpush1.msra.mxu0 0.0
        %668 = vmatprep.subr.mxu0 0.0
        %669 = vmatpush1.msra.mxu0 0.0
        %670 = vmatprep.subr.mxu0 0.0
        %671 = vmatpush1.msra.mxu0 0.0
        %672 = vmatprep.subr.mxu0 0.0
        %673 = vmatpush1.msra.mxu0 0.0
        %674 = vmatprep.subr.mxu0 0.0
        %675 = vmatpush1.msra.mxu0 0.0
        %676 = vmatprep.subr.mxu0 0.0
        %677 = vmatpush1.msra.mxu0 0.0
        %678 = vmatprep.subr.mxu0 0.0
        %679 = vmatpush1.msra.mxu0 0.0
        %680 = vmatprep.subr.mxu0 0.0
        %681 = vmatpush1.msra.mxu0 0.0
        %682 = vmatprep.subr.mxu0 0.0
        %683 = vmatpush1.msra.mxu0 0.0
        %684 = vmatprep.subr.mxu0 0.0
        %685 = vmatpush1.msra.mxu0 0.0
        %686 = vmatprep.mubr.f32.mxu0 0.0
        %687 = vmatmul.mubr.f32.gmra.mrb[0].mxu0 %v549
        %v688 = vpop.f32.mrb[0].mxu0
        %v689 = vadd.f32 0.0, %v688
        %v690 = vpop.f32.mrb[0].mxu0
        %691 = vdwg.mxu0
        %v692 = vadd.f32 %v545, %v689
        %693 = vmatprep.subr.mxu0 0.0
        %694 = vmatpush1.msra.mxu0 %v214
        %695 = vmatprep.subr.mxu0 0.0
        %696 = vmatpush1.msra.mxu0 %v215
        %697 = vmatprep.subr.mxu0 0.0
        %698 = vmatpush1.msra.mxu0 %v216
        %699 = vmatprep.subr.mxu0 0.0
        %700 = vmatpush1.msra.mxu0 %v217
        %701 = vmatprep.subr.mxu0 0.0
        %702 = vmatpush1.msra.mxu0 0.0
        %703 = vmatprep.subr.mxu0 0.0
        %704 = vmatpush1.msra.mxu0 0.0
        %705 = vmatprep.subr.mxu0 0.0
        %706 = vmatpush1.msra.mxu0 0.0
        %707 = vmatprep.subr.mxu0 0.0
        %708 = vmatpush1.msra.mxu0 0.0
        %709 = vmatprep.subr.mxu0 0.0
        %710 = vmatpush1.msra.mxu0 0.0
        %711 = vmatprep.subr.mxu0 0.0
        %712 = vmatpush1.msra.mxu0 0.0
        %713 = vmatprep.subr.mxu0 0.0
        %714 = vmatpush1.msra.mxu0 0.0
        %715 = vmatprep.subr.mxu0 0.0
        %716 = vmatpush1.msra.mxu0 0.0
        %717 = vmatprep.subr.mxu0 0.0
        %718 = vmatpush1.msra.mxu0 0.0
        %719 = vmatprep.subr.mxu0 0.0
        %720 = vmatpush1.msra.mxu0 0.0
        %721 = vmatprep.subr.mxu0 0.0
        %722 = vmatpush1.msra.mxu0 0.0
        %723 = vmatprep.subr.mxu0 0.0
        %724 = vmatpush1.msra.mxu0 0.0
        %725 = vmatprep.subr.mxu0 0.0
        %726 = vmatpush1.msra.mxu0 0.0
        %727 = vmatprep.subr.mxu0 0.0
        %728 = vmatpush1.msra.mxu0 0.0
        %729 = vmatprep.subr.mxu0 0.0
        %730 = vmatpush1.msra.mxu0 0.0
        %731 = vmatprep.subr.mxu0 0.0
        %732 = vmatpush1.msra.mxu0 0.0
        %733 = vmatprep.subr.mxu0 0.0
        %734 = vmatpush1.msra.mxu0 0.0
        %735 = vmatprep.subr.mxu0 0.0
        %736 = vmatpush1.msra.mxu0 0.0
        %737 = vmatprep.subr.mxu0 0.0
        %738 = vmatpush1.msra.mxu0 0.0
        %739 = vmatprep.subr.mxu0 0.0
        %740 = vmatpush1.msra.mxu0 0.0
        %741 = vmatprep.subr.mxu0 0.0
        %742 = vmatpush1.msra.mxu0 0.0
        %743 = vmatprep.subr.mxu0 0.0
        %744 = vmatpush1.msra.mxu0 0.0
        %745 = vmatprep.subr.mxu0 0.0
        %746 = vmatpush1.msra.mxu0 0.0
        %747 = vmatprep.subr.mxu0 0.0
        %748 = vmatpush1.msra.mxu0 0.0
        %749 = vmatprep.subr.mxu0 0.0
        %750 = vmatpush1.msra.mxu0 0.0
        %751 = vmatprep.subr.mxu0 0.0
        %752 = vmatpush1.msra.mxu0 0.0
        %753 = vmatprep.subr.mxu0 0.0
        %754 = vmatpush1.msra.mxu0 0.0
        %755 = vmatprep.subr.mxu0 0.0
        %756 = vmatpush1.msra.mxu0 0.0
        %757 = vmatprep.mubr.f32.mxu0 0.0
        %758 = vmatmul.mubr.f32.gmra.mrb[0].mxu0 %v549
        %v759 = vpop.f32.mrb[0].mxu0
        %v760 = vadd.f32 0.0, %v759
        %v761 = vpop.f32.mrb[0].mxu0
        %762 = vdwg.mxu0
        %v763 = vadd.f32 %v546, %v760
        %764 = vmatprep.subr.mxu0 0.0
        %765 = vmatpush1.msra.mxu0 %v219
        %766 = vmatprep.subr.mxu0 0.0
        %767 = vmatpush1.msra.mxu0 %v220
        %768 = vmatprep.subr.mxu0 0.0
        %769 = vmatpush1.msra.mxu0 %v221
        %770 = vmatprep.subr.mxu0 0.0
        %771 = vmatpush1.msra.mxu0 %v222
        %772 = vmatprep.subr.mxu0 0.0
        %773 = vmatpush1.msra.mxu0 0.0
        %774 = vmatprep.subr.mxu0 0.0
        %775 = vmatpush1.msra.mxu0 0.0
        %776 = vmatprep.subr.mxu0 0.0
        %777 = vmatpush1.msra.mxu0 0.0
        %778 = vmatprep.subr.mxu0 0.0
        %779 = vmatpush1.msra.mxu0 0.0
        %780 = vmatprep.subr.mxu0 0.0
        %781 = vmatpush1.msra.mxu0 0.0
        %782 = vmatprep.subr.mxu0 0.0
        %783 = vmatpush1.msra.mxu0 0.0
        %784 = vmatprep.subr.mxu0 0.0
        %785 = vmatpush1.msra.mxu0 0.0
        %786 = vmatprep.subr.mxu0 0.0
        %787 = vmatpush1.msra.mxu0 0.0
        %788 = vmatprep.subr.mxu0 0.0
        %789 = vmatpush1.msra.mxu0 0.0
        %790 = vmatprep.subr.mxu0 0.0
        %791 = vmatpush1.msra.mxu0 0.0
        %792 = vmatprep.subr.mxu0 0.0
        %793 = vmatpush1.msra.mxu0 0.0
        %794 = vmatprep.subr.mxu0 0.0
        %795 = vmatpush1.msra.mxu0 0.0
        %796 = vmatprep.subr.mxu0 0.0
        %797 = vmatpush1.msra.mxu0 0.0
        %798 = vmatprep.subr.mxu0 0.0
        %799 = vmatpush1.msra.mxu0 0.0
        %800 = vmatprep.subr.mxu0 0.0
        %801 = vmatpush1.msra.mxu0 0.0
        %802 = vmatprep.subr.mxu0 0.0
        %803 = vmatpush1.msra.mxu0 0.0
        %804 = vmatprep.subr.mxu0 0.0
        %805 = vmatpush1.msra.mxu0 0.0
        %806 = vmatprep.subr.mxu0 0.0
        %807 = vmatpush1.msra.mxu0 0.0
        %808 = vmatprep.subr.mxu0 0.0
        %809 = vmatpush1.msra.mxu0 0.0
        %810 = vmatprep.subr.mxu0 0.0
        %811 = vmatpush1.msra.mxu0 0.0
        %812 = vmatprep.subr.mxu0 0.0
        %813 = vmatpush1.msra.mxu0 0.0
        %814 = vmatprep.subr.mxu0 0.0
        %815 = vmatpush1.msra.mxu0 0.0
        %816 = vmatprep.subr.mxu0 0.0
        %817 = vmatpush1.msra.mxu0 0.0
        %818 = vmatprep.subr.mxu0 0.0
        %819 = vmatpush1.msra.mxu0 0.0
        %820 = vmatprep.subr.mxu0 0.0
        %821 = vmatpush1.msra.mxu0 0.0
        %822 = vmatprep.subr.mxu0 0.0
        %823 = vmatpush1.msra.mxu0 0.0
        %824 = vmatprep.subr.mxu0 0.0
        %825 = vmatpush1.msra.mxu0 0.0
        %826 = vmatprep.subr.mxu0 0.0
        %827 = vmatpush1.msra.mxu0 0.0
        %828 = vmatprep.mubr.f32.mxu0 0.0
        %829 = vmatmul.mubr.f32.gmra.mrb[0].mxu0 %v549
        %v830 = vpop.f32.mrb[0].mxu0
        %v831 = vadd.f32 0.0, %v830
        %v832 = vpop.f32.mrb[0].mxu0
        %833 = vdwg.mxu0
        %v834 = vadd.f32 %v547, %v831
        %v835 = vxor.u32 %v621, 2147483648
        %v836 = vmul.f32 %v835, 1.442695
        %v837 = vpow.pop %v836
        %v838 = vadd.f32 %v837, 1.0
        %v839 = vrcp.pop %v838
        %v840 = vmul.f32 1.0, %v839
        %v841 = vxor.u32 %v692, 2147483648
        %v842 = vmul.f32 %v841, 1.442695
        %v843 = vpow.pop %v842
        %v844 = vadd.f32 %v843, 1.0
        %v845 = vrcp.pop %v844
        %v846 = vmul.f32 1.0, %v845
        %v847 = vtanh.pop %v763
        %v848 = vxor.u32 %v834, 2147483648
        %v849 = vmul.f32 %v848, 1.442695
        %v850 = vpow.pop %v849
        %v851 = vadd.f32 %v850, 1.0
        %v852 = vrcp.pop %v851
        %v853 = vmul.f32 1.0, %v852
        %v854 = vmul.f32 %v846, %v538
        %v855 = vmul.f32 %v840, %v847
        %v856 = vadd.f32 %v854, %v855
        %v857 = vtanh.pop %v856
        %v858 = vmul.f32 %v853, %v857
        %s859 = scalar_lea.vmem %s194, 2 [#allocation9]
        %860 = vst.msk [vmem:[%s859] sm:$0x3] %vm541, %v858
        %s861 = scalar_lea.vmem %s170, 16 [#allocation4]
        %v862 = vld [vmem:[%s861] sm:$0x3]
        %v863 = vld [vmem:[%s861 + $0x2] sm:$0x3]
        %v864 = vld [vmem:[%s861 + $0x4] sm:$0x3]
        %v865 = vld [vmem:[%s861 + $0x6] sm:$0x3]
        %v867 = vsel %vm229, %v858, 0
        %869 = vmatprep.subr.mxu0 0.0
        %870 = vmatpush1.msra.mxu0 %v204
        %871 = vmatprep.subr.mxu0 0.0
        %872 = vmatpush1.msra.mxu0 %v205
        %873 = vmatprep.subr.mxu0 0.0
        %874 = vmatpush1.msra.mxu0 %v206
        %875 = vmatprep.subr.mxu0 0.0
        %876 = vmatpush1.msra.mxu0 %v207
        %877 = vmatprep.subr.mxu0 0.0
        %878 = vmatpush1.msra.mxu0 0.0
        %879 = vmatprep.subr.mxu0 0.0
        %880 = vmatpush1.msra.mxu0 0.0
        %881 = vmatprep.subr.mxu0 0.0
        %882 = vmatpush1.msra.mxu0 0.0
        %883 = vmatprep.subr.mxu0 0.0
        %884 = vmatpush1.msra.mxu0 0.0
        %885 = vmatprep.subr.mxu0 0.0
        %886 = vmatpush1.msra.mxu0 0.0
        %887 = vmatprep.subr.mxu0 0.0
        %888 = vmatpush1.msra.mxu0 0.0
        %889 = vmatprep.subr.mxu0 0.0
        %890 = vmatpush1.msra.mxu0 0.0
        %891 = vmatprep.subr.mxu0 0.0
        %892 = vmatpush1.msra.mxu0 0.0
        %893 = vmatprep.subr.mxu0 0.0
        %894 = vmatpush1.msra.mxu0 0.0
        %895 = vmatprep.subr.mxu0 0.0
        %896 = vmatpush1.msra.mxu0 0.0
        %897 = vmatprep.subr.mxu0 0.0
        %898 = vmatpush1.msra.mxu0 0.0
        %899 = vmatprep.subr.mxu0 0.0
        %900 = vmatpush1.msra.mxu0 0.0
        %901 = vmatprep.subr.mxu0 0.0
        %902 = vmatpush1.msra.mxu0 0.0
        %903 = vmatprep.subr.mxu0 0.0
        %904 = vmatpush1.msra.mxu0 0.0
        %905 = vmatprep.subr.mxu0 0.0
        %906 = vmatpush1.msra.mxu0 0.0
        %907 = vmatprep.subr.mxu0 0.0
        %908 = vmatpush1.msra.mxu0 0.0
        %909 = vmatprep.subr.mxu0 0.0
        %910 = vmatpush1.msra.mxu0 0.0
        %911 = vmatprep.subr.mxu0 0.0
        %912 = vmatpush1.msra.mxu0 0.0
        %913 = vmatprep.subr.mxu0 0.0
        %914 = vmatpush1.msra.mxu0 0.0
        %915 = vmatprep.subr.mxu0 0.0
        %916 = vmatpush1.msra.mxu0 0.0
        %917 = vmatprep.subr.mxu0 0.0
        %918 = vmatpush1.msra.mxu0 0.0
        %919 = vmatprep.subr.mxu0 0.0
        %920 = vmatpush1.msra.mxu0 0.0
        %921 = vmatprep.subr.mxu0 0.0
        %922 = vmatpush1.msra.mxu0 0.0
        %923 = vmatprep.subr.mxu0 0.0
        %924 = vmatpush1.msra.mxu0 0.0
        %925 = vmatprep.subr.mxu0 0.0
        %926 = vmatpush1.msra.mxu0 0.0
        %927 = vmatprep.subr.mxu0 0.0
        %928 = vmatpush1.msra.mxu0 0.0
        %929 = vmatprep.subr.mxu0 0.0
        %930 = vmatpush1.msra.mxu0 0.0
        %931 = vmatprep.subr.mxu0 0.0
        %932 = vmatpush1.msra.mxu0 0.0
        %933 = vmatprep.mubr.f32.mxu0 0.0
        %934 = vmatmul.mubr.f32.gmra.mrb[0].mxu0 %v867
        %v935 = vpop.f32.mrb[0].mxu0
        %v936 = vadd.f32 0.0, %v935
        %v937 = vpop.f32.mrb[0].mxu0
        %938 = vdwg.mxu0
        %v939 = vadd.f32 %v862, %v936
        %940 = vmatprep.subr.mxu0 0.0
        %941 = vmatpush1.msra.mxu0 %v209
        %942 = vmatprep.subr.mxu0 0.0
        %943 = vmatpush1.msra.mxu0 %v210
        %944 = vmatprep.subr.mxu0 0.0
        %945 = vmatpush1.msra.mxu0 %v211
        %946 = vmatprep.subr.mxu0 0.0
        %947 = vmatpush1.msra.mxu0 %v212
        %948 = vmatprep.subr.mxu0 0.0
        %949 = vmatpush1.msra.mxu0 0.0
        %950 = vmatprep.subr.mxu0 0.0
        %951 = vmatpush1.msra.mxu0 0.0
        %952 = vmatprep.subr.mxu0 0.0
        %953 = vmatpush1.msra.mxu0 0.0
        %954 = vmatprep.subr.mxu0 0.0
        %955 = vmatpush1.msra.mxu0 0.0
        %956 = vmatprep.subr.mxu0 0.0
        %957 = vmatpush1.msra.mxu0 0.0
        %958 = vmatprep.subr.mxu0 0.0
        %959 = vmatpush1.msra.mxu0 0.0
        %960 = vmatprep.subr.mxu0 0.0
        %961 = vmatpush1.msra.mxu0 0.0
        %962 = vmatprep.subr.mxu0 0.0
        %963 = vmatpush1.msra.mxu0 0.0
        %964 = vmatprep.subr.mxu0 0.0
        %965 = vmatpush1.msra.mxu0 0.0
        %966 = vmatprep.subr.mxu0 0.0
        %967 = vmatpush1.msra.mxu0 0.0
        %968 = vmatprep.subr.mxu0 0.0
        %969 = vmatpush1.msra.mxu0 0.0
        %970 = vmatprep.subr.mxu0 0.0
        %971 = vmatpush1.msra.mxu0 0.0
        %972 = vmatprep.subr.mxu0 0.0
        %973 = vmatpush1.msra.mxu0 0.0
        %974 = vmatprep.subr.mxu0 0.0
        %975 = vmatpush1.msra.mxu0 0.0
        %976 = vmatprep.subr.mxu0 0.0
        %977 = vmatpush1.msra.mxu0 0.0
        %978 = vmatprep.subr.mxu0 0.0
        %979 = vmatpush1.msra.mxu0 0.0
        %980 = vmatprep.subr.mxu0 0.0
        %981 = vmatpush1.msra.mxu0 0.0
        %982 = vmatprep.subr.mxu0 0.0
        %983 = vmatpush1.msra.mxu0 0.0
        %984 = vmatprep.subr.mxu0 0.0
        %985 = vmatpush1.msra.mxu0 0.0
        %986 = vmatprep.subr.mxu0 0.0
        %987 = vmatpush1.msra.mxu0 0.0
        %988 = vmatprep.subr.mxu0 0.0
        %989 = vmatpush1.msra.mxu0 0.0
        %990 = vmatprep.subr.mxu0 0.0
        %991 = vmatpush1.msra.mxu0 0.0
        %992 = vmatprep.subr.mxu0 0.0
        %993 = vmatpush1.msra.mxu0 0.0
        %994 = vmatprep.subr.mxu0 0.0
        %995 = vmatpush1.msra.mxu0 0.0
        %996 = vmatprep.subr.mxu0 0.0
        %997 = vmatpush1.msra.mxu0 0.0
        %998 = vmatprep.subr.mxu0 0.0
        %999 = vmatpush1.msra.mxu0 0.0
        %1000 = vmatprep.subr.mxu0 0.0
        %1001 = vmatpush1.msra.mxu0 0.0
        %1002 = vmatprep.subr.mxu0 0.0
        %1003 = vmatpush1.msra.mxu0 0.0
        %1004 = vmatprep.mubr.f32.mxu0 0.0
        %1005 = vmatmul.mubr.f32.gmra.mrb[0].mxu0 %v867
        %v1006 = vpop.f32.mrb[0].mxu0
        %v1007 = vadd.f32 0.0, %v1006
        %v1008 = vpop.f32.mrb[0].mxu0
        %1009 = vdwg.mxu0
        %v1010 = vadd.f32 %v863, %v1007
        %1011 = vmatprep.subr.mxu0 0.0
        %1012 = vmatpush1.msra.mxu0 %v214
        %1013 = vmatprep.subr.mxu0 0.0
        %1014 = vmatpush1.msra.mxu0 %v215
        %1015 = vmatprep.subr.mxu0 0.0
        %1016 = vmatpush1.msra.mxu0 %v216
        %1017 = vmatprep.subr.mxu0 0.0
        %1018 = vmatpush1.msra.mxu0 %v217
        %1019 = vmatprep.subr.mxu0 0.0
        %1020 = vmatpush1.msra.mxu0 0.0
        %1021 = vmatprep.subr.mxu0 0.0
        %1022 = vmatpush1.msra.mxu0 0.0
        %1023 = vmatprep.subr.mxu0 0.0
        %1024 = vmatpush1.msra.mxu0 0.0
        %1025 = vmatprep.subr.mxu0 0.0
        %1026 = vmatpush1.msra.mxu0 0.0
        %1027 = vmatprep.subr.mxu0 0.0
        %1028 = vmatpush1.msra.mxu0 0.0
        %1029 = vmatprep.subr.mxu0 0.0
        %1030 = vmatpush1.msra.mxu0 0.0
        %1031 = vmatprep.subr.mxu0 0.0
        %1032 = vmatpush1.msra.mxu0 0.0
        %1033 = vmatprep.subr.mxu0 0.0
        %1034 = vmatpush1.msra.mxu0 0.0
        %1035 = vmatprep.subr.mxu0 0.0
        %1036 = vmatpush1.msra.mxu0 0.0
        %1037 = vmatprep.subr.mxu0 0.0
        %1038 = vmatpush1.msra.mxu0 0.0
        %1039 = vmatprep.subr.mxu0 0.0
        %1040 = vmatpush1.msra.mxu0 0.0
        %1041 = vmatprep.subr.mxu0 0.0
        %1042 = vmatpush1.msra.mxu0 0.0
        %1043 = vmatprep.subr.mxu0 0.0
        %1044 = vmatpush1.msra.mxu0 0.0
        %1045 = vmatprep.subr.mxu0 0.0
        %1046 = vmatpush1.msra.mxu0 0.0
        %1047 = vmatprep.subr.mxu0 0.0
        %1048 = vmatpush1.msra.mxu0 0.0
        %1049 = vmatprep.subr.mxu0 0.0
        %1050 = vmatpush1.msra.mxu0 0.0
        %1051 = vmatprep.subr.mxu0 0.0
        %1052 = vmatpush1.msra.mxu0 0.0
        %1053 = vmatprep.subr.mxu0 0.0
        %1054 = vmatpush1.msra.mxu0 0.0
        %1055 = vmatprep.subr.mxu0 0.0
        %1056 = vmatpush1.msra.mxu0 0.0
        %1057 = vmatprep.subr.mxu0 0.0
        %1058 = vmatpush1.msra.mxu0 0.0
        %1059 = vmatprep.subr.mxu0 0.0
        %1060 = vmatpush1.msra.mxu0 0.0
        %1061 = vmatprep.subr.mxu0 0.0
        %1062 = vmatpush1.msra.mxu0 0.0
        %1063 = vmatprep.subr.mxu0 0.0
        %1064 = vmatpush1.msra.mxu0 0.0
        %1065 = vmatprep.subr.mxu0 0.0
        %1066 = vmatpush1.msra.mxu0 0.0
        %1067 = vmatprep.subr.mxu0 0.0
        %1068 = vmatpush1.msra.mxu0 0.0
        %1069 = vmatprep.subr.mxu0 0.0
        %1070 = vmatpush1.msra.mxu0 0.0
        %1071 = vmatprep.subr.mxu0 0.0
        %1072 = vmatpush1.msra.mxu0 0.0
        %1073 = vmatprep.subr.mxu0 0.0
        %1074 = vmatpush1.msra.mxu0 0.0
        %1075 = vmatprep.mubr.f32.mxu0 0.0
        %1076 = vmatmul.mubr.f32.gmra.mrb[0].mxu0 %v867
        %v1077 = vpop.f32.mrb[0].mxu0
        %v1078 = vadd.f32 0.0, %v1077
        %v1079 = vpop.f32.mrb[0].mxu0
        %1080 = vdwg.mxu0
        %v1081 = vadd.f32 %v864, %v1078
        %1082 = vmatprep.subr.mxu0 0.0
        %1083 = vmatpush1.msra.mxu0 %v219
        %1084 = vmatprep.subr.mxu0 0.0
        %1085 = vmatpush1.msra.mxu0 %v220
        %1086 = vmatprep.subr.mxu0 0.0
        %1087 = vmatpush1.msra.mxu0 %v221
        %1088 = vmatprep.subr.mxu0 0.0
        %1089 = vmatpush1.msra.mxu0 %v222
        %1090 = vmatprep.subr.mxu0 0.0
        %1091 = vmatpush1.msra.mxu0 0.0
        %1092 = vmatprep.subr.mxu0 0.0
        %1093 = vmatpush1.msra.mxu0 0.0
        %1094 = vmatprep.subr.mxu0 0.0
        %1095 = vmatpush1.msra.mxu0 0.0
        %1096 = vmatprep.subr.mxu0 0.0
        %1097 = vmatpush1.msra.mxu0 0.0
        %1098 = vmatprep.subr.mxu0 0.0
        %1099 = vmatpush1.msra.mxu0 0.0
        %1100 = vmatprep.subr.mxu0 0.0
        %1101 = vmatpush1.msra.mxu0 0.0
        %1102 = vmatprep.subr.mxu0 0.0
        %1103 = vmatpush1.msra.mxu0 0.0
        %1104 = vmatprep.subr.mxu0 0.0
        %1105 = vmatpush1.msra.mxu0 0.0
        %1106 = vmatprep.subr.mxu0 0.0
        %1107 = vmatpush1.msra.mxu0 0.0
        %1108 = vmatprep.subr.mxu0 0.0
        %1109 = vmatpush1.msra.mxu0 0.0
        %1110 = vmatprep.subr.mxu0 0.0
        %1111 = vmatpush1.msra.mxu0 0.0
        %1112 = vmatprep.subr.mxu0 0.0
        %1113 = vmatpush1.msra.mxu0 0.0
        %1114 = vmatprep.subr.mxu0 0.0
        %1115 = vmatpush1.msra.mxu0 0.0
        %1116 = vmatprep.subr.mxu0 0.0
        %1117 = vmatpush1.msra.mxu0 0.0
        %1118 = vmatprep.subr.mxu0 0.0
        %1119 = vmatpush1.msra.mxu0 0.0
        %1120 = vmatprep.subr.mxu0 0.0
        %1121 = vmatpush1.msra.mxu0 0.0
        %1122 = vmatprep.subr.mxu0 0.0
        %1123 = vmatpush1.msra.mxu0 0.0
        %1124 = vmatprep.subr.mxu0 0.0
        %1125 = vmatpush1.msra.mxu0 0.0
        %1126 = vmatprep.subr.mxu0 0.0
        %1127 = vmatpush1.msra.mxu0 0.0
        %1128 = vmatprep.subr.mxu0 0.0
        %1129 = vmatpush1.msra.mxu0 0.0
        %1130 = vmatprep.subr.mxu0 0.0
        %1131 = vmatpush1.msra.mxu0 0.0
        %1132 = vmatprep.subr.mxu0 0.0
        %1133 = vmatpush1.msra.mxu0 0.0
        %1134 = vmatprep.subr.mxu0 0.0
        %1135 = vmatpush1.msra.mxu0 0.0
        %1136 = vmatprep.subr.mxu0 0.0
        %1137 = vmatpush1.msra.mxu0 0.0
        %1138 = vmatprep.subr.mxu0 0.0
        %1139 = vmatpush1.msra.mxu0 0.0
        %1140 = vmatprep.subr.mxu0 0.0
        %1141 = vmatpush1.msra.mxu0 0.0
        %1142 = vmatprep.subr.mxu0 0.0
        %1143 = vmatpush1.msra.mxu0 0.0
        %1144 = vmatprep.subr.mxu0 0.0
        %1145 = vmatpush1.msra.mxu0 0.0
        %1146 = vmatprep.mubr.f32.mxu0 0.0
        %1147 = vmatmul.mubr.f32.gmra.mrb[0].mxu0 %v867
        %v1148 = vpop.f32.mrb[0].mxu0
        %v1149 = vadd.f32 0.0, %v1148
        %v1150 = vpop.f32.mrb[0].mxu0
        %1151 = vdwg.mxu0
        %v1152 = vadd.f32 %v865, %v1149
        %v1153 = vxor.u32 %v939, 2147483648
        %v1154 = vmul.f32 %v1153, 1.442695
        %v1155 = vpow.pop %v1154
        %v1156 = vadd.f32 %v1155, 1.0
        %v1157 = vrcp.pop %v1156
        %v1158 = vmul.f32 1.0, %v1157
        %v1159 = vxor.u32 %v1010, 2147483648
        %v1160 = vmul.f32 %v1159, 1.442695
        %v1161 = vpow.pop %v1160
        %v1162 = vadd.f32 %v1161, 1.0
        %v1163 = vrcp.pop %v1162
        %v1164 = vmul.f32 1.0, %v1163
        %v1165 = vtanh.pop %v1081
        %v1166 = vxor.u32 %v1152, 2147483648
        %v1167 = vmul.f32 %v1166, 1.442695
        %v1168 = vpow.pop %v1167
        %v1169 = vadd.f32 %v1168, 1.0
        %v1170 = vrcp.pop %v1169
        %v1171 = vmul.f32 1.0, %v1170
        %v1172 = vmul.f32 %v1164, %v856
        %v1173 = vmul.f32 %v1158, %v1165
        %v1174 = vadd.f32 %v1172, %v1173
        %v1175 = vtanh.pop %v1174
        %v1176 = vmul.f32 %v1171, %v1175
        %s1177 = scalar_lea.vmem %s194, 4 [#allocation9]
        %1178 = vst.msk [vmem:[%s1177] sm:$0x3] %vm541, %v1176
        %s1179 = scalar_lea.vmem %s170, 24 [#allocation4]
        %v1180 = vld [vmem:[%s1179] sm:$0x3]
        %v1181 = vld [vmem:[%s1179 + $0x2] sm:$0x3]
        %v1182 = vld [vmem:[%s1179 + $0x4] sm:$0x3]
        %v1183 = vld [vmem:[%s1179 + $0x6] sm:$0x3]
        %v1185 = vsel %vm229, %v1176, 0
        %1187 = vmatprep.subr.mxu0 0.0
        %1188 = vmatpush1.msra.mxu0 %v204
        %1189 = vmatprep.subr.mxu0 0.0
        %1190 = vmatpush1.msra.mxu0 %v205
        %1191 = vmatprep.subr.mxu0 0.0
        %1192 = vmatpush1.msra.mxu0 %v206
        %1193 = vmatprep.subr.mxu0 0.0
        %1194 = vmatpush1.msra.mxu0 %v207
        %1195 = vmatprep.subr.mxu0 0.0
        %1196 = vmatpush1.msra.mxu0 0.0
        %1197 = vmatprep.subr.mxu0 0.0
        %1198 = vmatpush1.msra.mxu0 0.0
        %1199 = vmatprep.subr.mxu0 0.0
        %1200 = vmatpush1.msra.mxu0 0.0
        %1201 = vmatprep.subr.mxu0 0.0
        %1202 = vmatpush1.msra.mxu0 0.0
        %1203 = vmatprep.subr.mxu0 0.0
        %1204 = vmatpush1.msra.mxu0 0.0
        %1205 = vmatprep.subr.mxu0 0.0
        %1206 = vmatpush1.msra.mxu0 0.0
        %1207 = vmatprep.subr.mxu0 0.0
        %1208 = vmatpush1.msra.mxu0 0.0
        %1209 = vmatprep.subr.mxu0 0.0
        %1210 = vmatpush1.msra.mxu0 0.0
        %1211 = vmatprep.subr.mxu0 0.0
        %1212 = vmatpush1.msra.mxu0 0.0
        %1213 = vmatprep.subr.mxu0 0.0
        %1214 = vmatpush1.msra.mxu0 0.0
        %1215 = vmatprep.subr.mxu0 0.0
        %1216 = vmatpush1.msra.mxu0 0.0
        %1217 = vmatprep.subr.mxu0 0.0
        %1218 = vmatpush1.msra.mxu0 0.0
        %1219 = vmatprep.subr.mxu0 0.0
        %1220 = vmatpush1.msra.mxu0 0.0
        %1221 = vmatprep.subr.mxu0 0.0
        %1222 = vmatpush1.msra.mxu0 0.0
        %1223 = vmatprep.subr.mxu0 0.0
        %1224 = vmatpush1.msra.mxu0 0.0
        %1225 = vmatprep.subr.mxu0 0.0
        %1226 = vmatpush1.msra.mxu0 0.0
        %1227 = vmatprep.subr.mxu0 0.0
        %1228 = vmatpush1.msra.mxu0 0.0
        %1229 = vmatprep.subr.mxu0 0.0
        %1230 = vmatpush1.msra.mxu0 0.0
        %1231 = vmatprep.subr.mxu0 0.0
        %1232 = vmatpush1.msra.mxu0 0.0
        %1233 = vmatprep.subr.mxu0 0.0
        %1234 = vmatpush1.msra.mxu0 0.0
        %1235 = vmatprep.subr.mxu0 0.0
        %1236 = vmatpush1.msra.mxu0 0.0
        %1237 = vmatprep.subr.mxu0 0.0
        %1238 = vmatpush1.msra.mxu0 0.0
        %1239 = vmatprep.subr.mxu0 0.0
        %1240 = vmatpush1.msra.mxu0 0.0
        %1241 = vmatprep.subr.mxu0 0.0
        %1242 = vmatpush1.msra.mxu0 0.0
        %1243 = vmatprep.subr.mxu0 0.0
        %1244 = vmatpush1.msra.mxu0 0.0
        %1245 = vmatprep.subr.mxu0 0.0
        %1246 = vmatpush1.msra.mxu0 0.0
        %1247 = vmatprep.subr.mxu0 0.0
        %1248 = vmatpush1.msra.mxu0 0.0
        %1249 = vmatprep.subr.mxu0 0.0
        %1250 = vmatpush1.msra.mxu0 0.0
        %1251 = vmatprep.mubr.f32.mxu0 0.0
        %1252 = vmatmul.mubr.f32.gmra.mrb[0].mxu0 %v1185
        %v1253 = vpop.f32.mrb[0].mxu0
        %v1254 = vadd.f32 0.0, %v1253
        %v1255 = vpop.f32.mrb[0].mxu0
        %1256 = vdwg.mxu0
        %v1257 = vadd.f32 %v1180, %v1254
        %1258 = vmatprep.subr.mxu0 0.0
        %1259 = vmatpush1.msra.mxu0 %v209
        %1260 = vmatprep.subr.mxu0 0.0
        %1261 = vmatpush1.msra.mxu0 %v210
        %1262 = vmatprep.subr.mxu0 0.0
        %1263 = vmatpush1.msra.mxu0 %v211
        %1264 = vmatprep.subr.mxu0 0.0
        %1265 = vmatpush1.msra.mxu0 %v212
        %1266 = vmatprep.subr.mxu0 0.0
        %1267 = vmatpush1.msra.mxu0 0.0
        %1268 = vmatprep.subr.mxu0 0.0
        %1269 = vmatpush1.msra.mxu0 0.0
        %1270 = vmatprep.subr.mxu0 0.0
        %1271 = vmatpush1.msra.mxu0 0.0
        %1272 = vmatprep.subr.mxu0 0.0
        %1273 = vmatpush1.msra.mxu0 0.0
        %1274 = vmatprep.subr.mxu0 0.0
        %1275 = vmatpush1.msra.mxu0 0.0
        %1276 = vmatprep.subr.mxu0 0.0
        %1277 = vmatpush1.msra.mxu0 0.0
        %1278 = vmatprep.subr.mxu0 0.0
        %1279 = vmatpush1.msra.mxu0 0.0
        %1280 = vmatprep.subr.mxu0 0.0
        %1281 = vmatpush1.msra.mxu0 0.0
        %1282 = vmatprep.subr.mxu0 0.0
        %1283 = vmatpush1.msra.mxu0 0.0
        %1284 = vmatprep.subr.mxu0 0.0
        %1285 = vmatpush1.msra.mxu0 0.0
        %1286 = vmatprep.subr.mxu0 0.0
        %1287 = vmatpush1.msra.mxu0 0.0
        %1288 = vmatprep.subr.mxu0 0.0
        %1289 = vmatpush1.msra.mxu0 0.0
        %1290 = vmatprep.subr.mxu0 0.0
        %1291 = vmatpush1.msra.mxu0 0.0
        %1292 = vmatprep.subr.mxu0 0.0
        %1293 = vmatpush1.msra.mxu0 0.0
        %1294 = vmatprep.subr.mxu0 0.0
        %1295 = vmatpush1.msra.mxu0 0.0
        %1296 = vmatprep.subr.mxu0 0.0
        %1297 = vmatpush1.msra.mxu0 0.0
        %1298 = vmatprep.subr.mxu0 0.0
        %1299 = vmatpush1.msra.mxu0 0.0
        %1300 = vmatprep.subr.mxu0 0.0
        %1301 = vmatpush1.msra.mxu0 0.0
        %1302 = vmatprep.subr.mxu0 0.0
        %1303 = vmatpush1.msra.mxu0 0.0
        %1304 = vmatprep.subr.mxu0 0.0
        %1305 = vmatpush1.msra.mxu0 0.0
        %1306 = vmatprep.subr.mxu0 0.0
        %1307 = vmatpush1.msra.mxu0 0.0
        %1308 = vmatprep.subr.mxu0 0.0
        %1309 = vmatpush1.msra.mxu0 0.0
        %1310 = vmatprep.subr.mxu0 0.0
        %1311 = vmatpush1.msra.mxu0 0.0
        %1312 = vmatprep.subr.mxu0 0.0
        %1313 = vmatpush1.msra.mxu0 0.0
        %1314 = vmatprep.subr.mxu0 0.0
        %1315 = vmatpush1.msra.mxu0 0.0
        %1316 = vmatprep.subr.mxu0 0.0
        %1317 = vmatpush1.msra.mxu0 0.0
        %1318 = vmatprep.subr.mxu0 0.0
        %1319 = vmatpush1.msra.mxu0 0.0
        %1320 = vmatprep.subr.mxu0 0.0
        %1321 = vmatpush1.msra.mxu0 0.0
        %1322 = vmatprep.mubr.f32.mxu0 0.0
        %1323 = vmatmul.mubr.f32.gmra.mrb[0].mxu0 %v1185
        %v1324 = vpop.f32.mrb[0].mxu0
        %v1325 = vadd.f32 0.0, %v1324
        %v1326 = vpop.f32.mrb[0].mxu0
        %1327 = vdwg.mxu0
        %v1328 = vadd.f32 %v1181, %v1325
        %1329 = vmatprep.subr.mxu0 0.0
        %1330 = vmatpush1.msra.mxu0 %v214
        %1331 = vmatprep.subr.mxu0 0.0
        %1332 = vmatpush1.msra.mxu0 %v215
        %1333 = vmatprep.subr.mxu0 0.0
        %1334 = vmatpush1.msra.mxu0 %v216
        %1335 = vmatprep.subr.mxu0 0.0
        %1336 = vmatpush1.msra.mxu0 %v217
        %1337 = vmatprep.subr.mxu0 0.0
        %1338 = vmatpush1.msra.mxu0 0.0
        %1339 = vmatprep.subr.mxu0 0.0
        %1340 = vmatpush1.msra.mxu0 0.0
        %1341 = vmatprep.subr.mxu0 0.0
        %1342 = vmatpush1.msra.mxu0 0.0
        %1343 = vmatprep.subr.mxu0 0.0
        %1344 = vmatpush1.msra.mxu0 0.0
        %1345 = vmatprep.subr.mxu0 0.0
        %1346 = vmatpush1.msra.mxu0 0.0
        %1347 = vmatprep.subr.mxu0 0.0
        %1348 = vmatpush1.msra.mxu0 0.0
        %1349 = vmatprep.subr.mxu0 0.0
        %1350 = vmatpush1.msra.mxu0 0.0
        %1351 = vmatprep.subr.mxu0 0.0
        %1352 = vmatpush1.msra.mxu0 0.0
        %1353 = vmatprep.subr.mxu0 0.0
        %1354 = vmatpush1.msra.mxu0 0.0
        %1355 = vmatprep.subr.mxu0 0.0
        %1356 = vmatpush1.msra.mxu0 0.0
        %1357 = vmatprep.subr.mxu0 0.0
        %1358 = vmatpush1.msra.mxu0 0.0
        %1359 = vmatprep.subr.mxu0 0.0
        %1360 = vmatpush1.msra.mxu0 0.0
        %1361 = vmatprep.subr.mxu0 0.0
        %1362 = vmatpush1.msra.mxu0 0.0
        %1363 = vmatprep.subr.mxu0 0.0
        %1364 = vmatpush1.msra.mxu0 0.0
        %1365 = vmatprep.subr.mxu0 0.0
        %1366 = vmatpush1.msra.mxu0 0.0
        %1367 = vmatprep.subr.mxu0 0.0
        %1368 = vmatpush1.msra.mxu0 0.0
        %1369 = vmatprep.subr.mxu0 0.0
        %1370 = vmatpush1.msra.mxu0 0.0
        %1371 = vmatprep.subr.mxu0 0.0
        %1372 = vmatpush1.msra.mxu0 0.0
        %1373 = vmatprep.subr.mxu0 0.0
        %1374 = vmatpush1.msra.mxu0 0.0
        %1375 = vmatprep.subr.mxu0 0.0
        %1376 = vmatpush1.msra.mxu0 0.0
        %1377 = vmatprep.subr.mxu0 0.0
        %1378 = vmatpush1.msra.mxu0 0.0
        %1379 = vmatprep.subr.mxu0 0.0
        %1380 = vmatpush1.msra.mxu0 0.0
        %1381 = vmatprep.subr.mxu0 0.0
        %1382 = vmatpush1.msra.mxu0 0.0
        %1383 = vmatprep.subr.mxu0 0.0
        %1384 = vmatpush1.msra.mxu0 0.0
        %1385 = vmatprep.subr.mxu0 0.0
        %1386 = vmatpush1.msra.mxu0 0.0
        %1387 = vmatprep.subr.mxu0 0.0
        %1388 = vmatpush1.msra.mxu0 0.0
        %1389 = vmatprep.subr.mxu0 0.0
        %1390 = vmatpush1.msra.mxu0 0.0
        %1391 = vmatprep.subr.mxu0 0.0
        %1392 = vmatpush1.msra.mxu0 0.0
        %1393 = vmatprep.mubr.f32.mxu0 0.0
        %1394 = vmatmul.mubr.f32.gmra.mrb[0].mxu0 %v1185
        %v1395 = vpop.f32.mrb[0].mxu0
        %v1396 = vadd.f32 0.0, %v1395
        %v1397 = vpop.f32.mrb[0].mxu0
        %1398 = vdwg.mxu0
        %v1399 = vadd.f32 %v1182, %v1396
        %1400 = vmatprep.subr.mxu0 0.0
        %1401 = vmatpush1.msra.mxu0 %v219
        %1402 = vmatprep.subr.mxu0 0.0
        %1403 = vmatpush1.msra.mxu0 %v220
        %1404 = vmatprep.subr.mxu0 0.0
        %1405 = vmatpush1.msra.mxu0 %v221
        %1406 = vmatprep.subr.mxu0 0.0
        %1407 = vmatpush1.msra.mxu0 %v222
        %1408 = vmatprep.subr.mxu0 0.0
        %1409 = vmatpush1.msra.mxu0 0.0
        %1410 = vmatprep.subr.mxu0 0.0
        %1411 = vmatpush1.msra.mxu0 0.0
        %1412 = vmatprep.subr.mxu0 0.0
        %1413 = vmatpush1.msra.mxu0 0.0
        %1414 = vmatprep.subr.mxu0 0.0
        %1415 = vmatpush1.msra.mxu0 0.0
        %1416 = vmatprep.subr.mxu0 0.0
        %1417 = vmatpush1.msra.mxu0 0.0
        %1418 = vmatprep.subr.mxu0 0.0
        %1419 = vmatpush1.msra.mxu0 0.0
        %1420 = vmatprep.subr.mxu0 0.0
        %1421 = vmatpush1.msra.mxu0 0.0
        %1422 = vmatprep.subr.mxu0 0.0
        %1423 = vmatpush1.msra.mxu0 0.0
        %1424 = vmatprep.subr.mxu0 0.0
        %1425 = vmatpush1.msra.mxu0 0.0
        %1426 = vmatprep.subr.mxu0 0.0
        %1427 = vmatpush1.msra.mxu0 0.0
        %1428 = vmatprep.subr.mxu0 0.0
        %1429 = vmatpush1.msra.mxu0 0.0
        %1430 = vmatprep.subr.mxu0 0.0
        %1431 = vmatpush1.msra.mxu0 0.0
        %1432 = vmatprep.subr.mxu0 0.0
        %1433 = vmatpush1.msra.mxu0 0.0
        %1434 = vmatprep.subr.mxu0 0.0
        %1435 = vmatpush1.msra.mxu0 0.0
        %1436 = vmatprep.subr.mxu0 0.0
        %1437 = vmatpush1.msra.mxu0 0.0
        %1438 = vmatprep.subr.mxu0 0.0
        %1439 = vmatpush1.msra.mxu0 0.0
        %1440 = vmatprep.subr.mxu0 0.0
        %1441 = vmatpush1.msra.mxu0 0.0
        %1442 = vmatprep.subr.mxu0 0.0
        %1443 = vmatpush1.msra.mxu0 0.0
        %1444 = vmatprep.subr.mxu0 0.0
        %1445 = vmatpush1.msra.mxu0 0.0
        %1446 = vmatprep.subr.mxu0 0.0
        %1447 = vmatpush1.msra.mxu0 0.0
        %1448 = vmatprep.subr.mxu0 0.0
        %1449 = vmatpush1.msra.mxu0 0.0
        %1450 = vmatprep.subr.mxu0 0.0
        %1451 = vmatpush1.msra.mxu0 0.0
        %1452 = vmatprep.subr.mxu0 0.0
        %1453 = vmatpush1.msra.mxu0 0.0
        %1454 = vmatprep.subr.mxu0 0.0
        %1455 = vmatpush1.msra.mxu0 0.0
        %1456 = vmatprep.subr.mxu0 0.0
        %1457 = vmatpush1.msra.mxu0 0.0
        %1458 = vmatprep.subr.mxu0 0.0
        %1459 = vmatpush1.msra.mxu0 0.0
        %1460 = vmatprep.subr.mxu0 0.0
        %1461 = vmatpush1.msra.mxu0 0.0
        %1462 = vmatprep.subr.mxu0 0.0
        %1463 = vmatpush1.msra.mxu0 0.0
        %1464 = vmatprep.mubr.f32.mxu0 0.0
        %1465 = vmatmul.mubr.f32.gmra.mrb[0].mxu0 %v1185
        %v1466 = vpop.f32.mrb[0].mxu0
        %v1467 = vadd.f32 0.0, %v1466
        %v1468 = vpop.f32.mrb[0].mxu0
        %1469 = vdwg.mxu0
        %v1470 = vadd.f32 %v1183, %v1467
        %v1471 = vxor.u32 %v1257, 2147483648
        %v1472 = vmul.f32 %v1471, 1.442695
        %v1473 = vpow.pop %v1472
        %v1474 = vadd.f32 %v1473, 1.0
        %v1475 = vrcp.pop %v1474
        %v1476 = vmul.f32 1.0, %v1475
        %v1477 = vxor.u32 %v1328, 2147483648
        %v1478 = vmul.f32 %v1477, 1.442695
        %v1479 = vpow.pop %v1478
        %v1480 = vadd.f32 %v1479, 1.0
        %v1481 = vrcp.pop %v1480
        %v1482 = vmul.f32 1.0, %v1481
        %v1483 = vtanh.pop %v1399
        %v1484 = vxor.u32 %v1470, 2147483648
        %v1485 = vmul.f32 %v1484, 1.442695
        %v1486 = vpow.pop %v1485
        %v1487 = vadd.f32 %v1486, 1.0
        %v1488 = vrcp.pop %v1487
        %v1489 = vmul.f32 1.0, %v1488
        %v1490 = vmul.f32 %v1482, %v1174
        %v1491 = vmul.f32 %v1476, %v1483
        %v1492 = vadd.f32 %v1490, %v1491
        %v1493 = vtanh.pop %v1492
        %v1494 = vmul.f32 %v1489, %v1493
        %s1495 = scalar_lea.vmem %s194, 6 [#allocation9]
        %1496 = vst.msk [vmem:[%s1495] sm:$0x3] %vm541, %v1494
        %1497 = vst.msk [vmem:[#allocation2] sm:$0x3] %vm541, %v1494
        %1498 = vst.msk [vmem:[#allocation3] sm:$0x3] %vm541, %v1492
        %s1499 = sand.u32 %s91, 1
        %s1500 = scalar_lea.sflag [#allocation6], %s1499
        %s1501 = sand.u32 %s91, 1
        %s1502 = smul.addr %s1501, 8
        %s1503 = scalar_lea.vmem [#allocation9], %s1502
        // Predicated region
        $region41: #{tpu_custom_call.1} parent=27 // pred_check
          %p1504 = pneg %p101
        $region42: #{tpu_custom_call.1} parent=27 // pred_check_branch
          %1506 = sbr.rel (%p1504) target = $region44
        $region43: #{tpu_custom_call.1} parent=27 // pred_region
          %s1507 = smul.u32 4, %s25
          %s1509 = ssub.s32 128, 128
          %1510 = vsyncadd %s1500, %s1509
          %s1511 = sadd.s32 %s24, %s1507
          %s1512 = smul.addr %s1511, 32
          %s1513 = scalar_lea.hbm %s2, %s1512
          %s1514 = sshll.u32 %s1503, 4
          %s1515 = int_to_ptr.vmem [resolvable:$true] %s1514
          %1520 = dma.vmem_to_hbm [thread:$0]  %s1515, 128, %s1513, %s1500, 32, 32, 2
        $region44: #{tpu_custom_call.1} parent=27 // pred_fallthru
          _
      $region28: #{tpu_custom_call.1} parent=5 // pred_fallthru
        _
      %p1521 = scmp.le.s32.totalorder 2, %s15
      // Predicated region
      $region45: #{tpu_custom_call.1} parent=5 // pred_check
        %p1522 = pneg %p1521
      $region46: #{tpu_custom_call.1} parent=5 // pred_check_branch
        %1524 = sbr.rel (%p1522) target = $region48
      $region47: #{tpu_custom_call.1} parent=5 // pred_region
        %s1525 = ssub.s32 %s15, 2
        // Predicated region
        $region49: #{tpu_custom_call.1} parent=47 // pred_check
          %p1526 = pneg %p107
        $region50: #{tpu_custom_call.1} parent=47 // pred_check_branch
          %1528 = sbr.rel (%p1526) target = $region52
        $region51: #{tpu_custom_call.1} parent=47 // pred_region
          %s1529 = sand.u32 %s92, 1
          %s1530 = scalar_lea.sflag [#allocation6], %s1529
          %s1531 = sand.u32 %s92, 1
          %s1532 = smul.addr %s1531, 8
          %s1533 = scalar_lea.vmem [#allocation9], %s1532
          %1534 = dma.done %s1530, 128
        $region52: #{tpu_custom_call.1} parent=47 // pred_fallthru
          _
      $region48: #{tpu_custom_call.1} parent=5 // pred_fallthru
        _
    $region6: #{tpu_custom_call.1} parent=1 // loop_footer
      %s19 = sadd.s32 1, %s15
    $region7: #{tpu_custom_call.1} parent=1 // loop_footer_branch
      %14 = sbr.rel target = $region3
    $region8: #{tpu_custom_call.1} parent=1 // loop_exit
      _
    %1535 = vsyncpa [#allocation5], 1
    %s1536 = scalar_lea.sflag [#allocation5], 1
    %1537 = vsyncpa %s1536, 1
    %1538 = vsyncpa [#allocation8], 1
    %1539 = vsyncpa [#allocation6], 1
    %s1540 = scalar_lea.sflag [#allocation6], 1
    %1541 = vsyncpa %s1540, 1

</llo_original>
